<compile_context>
chip_gen: v7x
topology: tpu7x:2x2x1
jax: 0.10.0
libtpu: 0.0.40
codegen_flags: <defaults>
</compile_context>

<pallas_src>
import jax
import jax.numpy as jnp
from jax import lax
from jax.experimental import pallas as pl
from jax.experimental.pallas import tpu as pltpu

categories = ['Audience', 'Brand', 'Color', 'Design', 'Event', 'Function', 'IP',
              'ItemCategory', 'Marketing', 'Material', 'Pattern', 'Place',
              'ProductModel', 'Shape', 'Smell', 'Spec', 'StopWord', 'Style', 'Time']
NER_VOCAB = len(categories)          # 19
NUM_CLASSES = NER_VOCAB + 1          # 20  (start_fc / end_fc output dim)
HEADS = NER_VOCAB + 1                # 20  (GlobalPointer heads)

# Small, TPU-friendly stand-ins for 768 / args.ner_head_size
HIDDEN = 128
HEAD_SIZE = 32
VOCAB = 100
MASK_NEG = 1e12

HEAD_BLOCK = 4                             # heads per grid step (head tiling)
NUM_GROUPS = HEADS // HEAD_BLOCK           # 5
SLAB = HEAD_BLOCK * HEAD_SIZE              # 128 (one lane-dense slab per projection kind)
QK_WIDTH = 4 * SLAB                        # 512 = [Q | Q@rot | K | K@rot]
SE_PAD = 128                               # lane-dense fused start/end output width


def pointer_ner_kernel(x_ref, mrow_ref, mcol_ref,
                       w_mid_ref, b_mid_ref,
                       w_se_ref, b_se_ref,
                       w_qk_ref, b_qk_ref,
                       cos_ref, sin_ref,
                       se_ref, gp_ref,
                       mid_scr):
    """grid = (batch, head_group). One head group (HEAD_BLOCK heads) per step."""
    hg = pl.program_id(1)

    # ---- head-group 0: mid_linear (Linear + ReLU; Dropout(0.1) = identity at eval),
    #      fused lane-padded start/end projection, and cache `mid` in VMEM scratch
    #      for the remaining head-group steps of this batch element.
    @pl.when(hg == 0)
    def _():
        x = x_ref[0]                                                    # (S, H)
        mid0 = jnp.dot(x, w_mid_ref[...],
                       preferred_element_type=jnp.float32) + b_mid_ref[...]
        mid0 = jnp.maximum(mid0, 0.0)                                   # ReLU
        mid_scr[...] = mid0
        se_ref[0] = (jnp.dot(mid0, w_se_ref[...],
                             preferred_element_type=jnp.float32) + b_se_ref[...])

    mid = mid_scr[...]                                                  # (S, H)

    # ---- one lane-dense fused projection for this head group ----
    # columns = [Q | Q@rot | K | K@rot], each SLAB=HEAD_BLOCK*HEAD_SIZE wide;
    # 1/sqrt(head_size) is pre-folded into the Q columns (wrapper).
    proj = (jnp.dot(mid, w_qk_ref[0], preferred_element_type=jnp.float32)
            + b_qk_ref[0])                                              # (S, 4*SLAB)

    cos = cos_ref[...]                                                  # (S, SLAB)
    sin = sin_ref[...]                                                  # (S, SLAB)
    # RoPE with the rotation folded into the weights: q*cos + (q@rot)*sin, no matmul.
    q = proj[:, 0:SLAB] * cos + proj[:, SLAB:2 * SLAB] * sin            # (S, SLAB)
    k = proj[:, 2 * SLAB:3 * SLAB] * cos + proj[:, 3 * SLAB:4 * SLAB] * sin

    # ---- combined keep mask: padding on both axes AND upper triangle (i <= j) ----
    pad = mcol_ref[0] * mrow_ref[0]                                     # (S, S)
    S = pad.shape[0]
    ii = lax.broadcasted_iota(jnp.int32, (S, S), 0)
    jj = lax.broadcasted_iota(jnp.int32, (S, S), 1)
    keep = (pad > 0.0) & (ii <= jj)

    # Small static unroll over the HEAD_BLOCK heads of this group.
    for i in range(HEAD_BLOCK):
        q_h = q[:, i * HEAD_SIZE:(i + 1) * HEAD_SIZE]                   # (S, hs)
        k_h = k[:, i * HEAD_SIZE:(i + 1) * HEAD_SIZE]                   # (S, hs)
        logits = lax.dot_general(q_h, k_h, (((1,), (1,)), ((), ())),
                                 preferred_element_type=jnp.float32)    # (S, S)
        gp_ref[0, i] = jnp.where(keep, logits, -MASK_NEG)


def _pack_heads(w):
    """(HEADS, R, HEAD_SIZE) -> (NUM_GROUPS, R, HEAD_BLOCK*HEAD_SIZE), heads grouped by 4."""
    h, r, d = w.shape
    return (w.reshape(NUM_GROUPS, HEAD_BLOCK, r, d)
             .transpose(0, 2, 1, 3)
             .reshape(NUM_GROUPS, r, HEAD_BLOCK * d))


def model_v2_forward(token_ids, attention_mask, params):
    # ---- glue (plain JAX): stand-in backbone -> hidden states ----
    seq_out = params["emb"][token_ids]                                  # (B, S, H) float32
    B, S, H = seq_out.shape

    mask_f = attention_mask.astype(jnp.float32)
    mask_row = mask_f.reshape(B, 1, S)
    mask_col = mask_f.reshape(B, S, 1)

    # ---- RoPE tables (SinusoidalPositionEmbedding, repeat-interleaved) ----
    idx = jnp.arange(HEAD_SIZE // 2, dtype=jnp.float32)
    inv_freq = jnp.power(10000.0, -2.0 * idx / HEAD_SIZE)               # (hs/2,)
    freqs = jnp.arange(S, dtype=jnp.float32)[:, None] * inv_freq[None, :]
    cos_pos = jnp.repeat(jnp.cos(freqs), 2, axis=-1)                    # (S, hs)
    sin_pos = jnp.repeat(jnp.sin(freqs), 2, axis=-1)                    # (S, hs)
    cos_g = jnp.tile(cos_pos, (1, HEAD_BLOCK))                          # (S, SLAB)
    sin_g = jnp.tile(sin_pos, (1, HEAD_BLOCK))                          # (S, SLAB)

    # Interleave-rotation matrix: (q @ R)[:, 2i] = -q[:, 2i+1], (q @ R)[:, 2i+1] = q[:, 2i]
    rot = jnp.zeros((HEAD_SIZE, HEAD_SIZE), jnp.float32)
    pair = jnp.arange(HEAD_SIZE // 2)
    rot = rot.at[2 * pair + 1, 2 * pair].set(-1.0)
    rot = rot.at[2 * pair, 2 * pair + 1].set(1.0)

    # ---- weight packing (all done once, outside the kernel) ----
    inv_scale = 1.0 / (HEAD_SIZE ** 0.5)
    wq_s = params["wq"] * inv_scale                                     # fold 1/sqrt(hs) into Q
    bq_s = params["bq"] * inv_scale
    wq_r = jnp.matmul(wq_s, rot)                                        # fold RoPE rotation
    bq_r = jnp.matmul(bq_s, rot)
    wk = params["wk"]
    bk = params["bk"]
    wk_r = jnp.matmul(wk, rot)
    bk_r = jnp.matmul(bk, rot)

    w_qk = jnp.concatenate([_pack_heads(wq_s), _pack_heads(wq_r),
                            _pack_heads(wk), _pack_heads(wk_r)], axis=-1)  # (G, H, 512)
    b_qk = jnp.concatenate([_pack_heads(bq_s), _pack_heads(bq_r),
                            _pack_heads(bk), _pack_heads(bk_r)], axis=-1)  # (G, 1, 512)

    # Fused, lane-padded start/end projection (lane-dense output store).
    w_se = jnp.zeros((H, SE_PAD), jnp.float32)
    w_se = w_se.at[:, :NUM_CLASSES].set(params["w_start"])
    w_se = w_se.at[:, NUM_CLASSES:2 * NUM_CLASSES].set(params["w_end"])
    b_se = jnp.zeros((1, SE_PAD), jnp.float32)
    b_se = b_se.at[:, :NUM_CLASSES].set(params["b_start"])
    b_se = b_se.at[:, NUM_CLASSES:2 * NUM_CLASSES].set(params["b_end"])

    grid = (B, NUM_GROUPS)

    def _const(shape):
        n = len(shape)
        return pl.BlockSpec(shape, lambda b, g, n=n: (0,) * n)

    in_specs = [
        pl.BlockSpec((1, S, H), lambda b, g: (b, 0, 0)),                # seq_out
        pl.BlockSpec((1, 1, S), lambda b, g: (b, 0, 0)),                # mask_row
        pl.BlockSpec((1, S, 1), lambda b, g: (b, 0, 0)),                # mask_col
        _const((H, H)), _const((1, H)),                                 # mid_linear
        _const((H, SE_PAD)), _const((1, SE_PAD)),                       # fused start/end
        pl.BlockSpec((1, H, QK_WIDTH), lambda b, g: (g, 0, 0)),         # fused q/k weights
        pl.BlockSpec((1, 1, QK_WIDTH), lambda b, g: (g, 0, 0)),         # fused q/k bias
        _const((S, SLAB)), _const((S, SLAB)),                           # cos / sin (tiled)
    ]
    out_specs = [
        pl.BlockSpec((1, S, SE_PAD), lambda b, g: (b, 0, 0)),           # start+end (padded)
        pl.BlockSpec((1, HEAD_BLOCK, S, S), lambda b, g: (b, g, 0, 0)), # gp head tile
    ]
    out_shape = (
        jax.ShapeDtypeStruct((B, S, SE_PAD), jnp.float32),
        jax.ShapeDtypeStruct((B, HEADS, S, S), jnp.float32),
    )

    se_out, gp_logits = pl.pallas_call(
        pointer_ner_kernel,
        grid=grid,
        in_specs=in_specs,
        out_specs=out_specs,
        out_shape=out_shape,
        scratch_shapes=[pltpu.VMEM((S, H), jnp.float32)],               # cached `mid`
        compiler_params=pltpu.CompilerParams(
            dimension_semantics=("parallel", "arbitrary")),
    )(seq_out, mask_row, mask_col,
      params["w_mid"], params["b_mid"],
      w_se, b_se, w_qk, b_qk, cos_g, sin_g)

    start_logits = se_out[..., :NUM_CLASSES]
    end_logits = se_out[..., NUM_CLASSES:2 * NUM_CLASSES]
    return (start_logits, end_logits), gp_logits


def reference_forward(token_ids, attention_mask, params):
    """Pure-JAX reference (same masking convention: keep -> scaled logits, else -1e12)."""
    hp = lax.Precision.HIGHEST
    seq_out = params["emb"][token_ids]
    mid = jnp.maximum(
        jnp.dot(seq_out, params["w_mid"], precision=hp) + params["b_mid"], 0.0)
    start = jnp.dot(mid, params["w_start"], precision=hp) + params["b_start"]
    end = jnp.dot(mid, params["w_end"], precision=hp) + params["b_end"]

    q = jnp.einsum('bsh,nhd->bnsd', mid, params["wq"], precision=hp) + params["bq"][None]
    k = jnp.einsum('bsh,nhd->bnsd', mid, params["wk"], precision=hp) + params["bk"][None]

    S = token_ids.shape[1]
    idx = jnp.arange(HEAD_SIZE // 2, dtype=jnp.float32)
    inv_freq = jnp.power(10000.0, -2.0 * idx / HEAD_SIZE)
    freqs = jnp.arange(S, dtype=jnp.float32)[:, None] * inv_freq[None, :]
    cos = jnp.repeat(jnp.cos(freqs), 2, axis=-1)
    sin = jnp.repeat(jnp.sin(freqs), 2, axis=-1)

    def rope(t):
        t2 = jnp.stack([-t[..., 1::2], t[..., 0::2]], axis=-1).reshape(t.shape)
        return t * cos + t2 * sin

    q = rope(q)
    k = rope(k)
    logits = jnp.einsum('bnsd,bntd->bnst', q, k, precision=hp) / (HEAD_SIZE ** 0.5)
    m = attention_mask.astype(jnp.float32)
    pad = m[:, None, :, None] * m[:, None, None, :]
    ii = jnp.arange(S)[:, None]
    jj = jnp.arange(S)[None, :]
    keep = (pad > 0) & (ii <= jj)
    gp = jnp.where(keep, logits, -MASK_NEG)
    return (start, end), gp


def init_params(key):
    ks = jax.random.split(key, 10)
    scale = 0.1
    return {
        "emb":     jax.random.normal(ks[0], (VOCAB, HIDDEN), jnp.float32) * scale,
        "w_mid":   jax.random.normal(ks[1], (HIDDEN, HIDDEN), jnp.float32) * scale,
        "b_mid":   jax.random.normal(ks[2], (1, HIDDEN), jnp.float32) * scale,
        "w_start": jax.random.normal(ks[3], (HIDDEN, NUM_CLASSES), jnp.float32) * scale,
        "b_start": jax.random.normal(ks[4], (1, NUM_CLASSES), jnp.float32) * scale,
        "w_end":   jax.random.normal(ks[5], (HIDDEN, NUM_CLASSES), jnp.float32) * scale,
        "b_end":   jax.random.normal(ks[6], (1, NUM_CLASSES), jnp.float32) * scale,
        # GlobalPointer dense weight Linear(H, heads*head_size*2), pre-split into q/k halves
        "wq":      jax.random.normal(ks[7], (HEADS, HIDDEN, HEAD_SIZE), jnp.float32) * scale,
        "bq":      jax.random.normal(ks[8], (HEADS, 1, HEAD_SIZE), jnp.float32) * scale,
        "wk":      jax.random.normal(ks[9], (HEADS, HIDDEN, HEAD_SIZE), jnp.float32) * scale,
        "bk":      jnp.zeros((HEADS, 1, HEAD_SIZE), jnp.float32),
    }


if __name__ == "__main__":
    B, S = 2, 16
    key = jax.random.PRNGKey(0)
    k_tok, k_par = jax.random.split(key)

    token_ids = jax.random.randint(k_tok, (B, S), 0, VOCAB, dtype=jnp.int32)
    lengths = jnp.array([S, S - 5], jnp.int32)
    attention_mask = (jnp.arange(S)[None, :] < lengths[:, None]).astype(jnp.int32)

    params = init_params(k_par)

    (start_logits, end_logits), gp_logits = model_v2_forward(token_ids, attention_mask, params)
    jax.block_until_ready((start_logits, end_logits, gp_logits))

    assert start_logits.shape == (B, S, NUM_CLASSES)
    assert end_logits.shape == (B, S, NUM_CLASSES)
    assert gp_logits.shape == (B, HEADS, S, S)

    # Correctness check against pure-JAX reference (generous fp tolerances).
    (start_ref, end_ref), gp_ref = reference_forward(token_ids, attention_mask, params)
    assert jnp.allclose(start_logits, start_ref, atol=1e-3, rtol=1e-2)
    assert jnp.allclose(end_logits, end_ref, atol=1e-3, rtol=1e-2)
    assert jnp.allclose(gp_logits, gp_ref, atol=1e-3, rtol=1e-2)

    print("KERNEL_OK")
</pallas_src>

<mosaic_0001>
module attributes {stable_mosaic.version = 11 : i64} {
  func.func @pointer_ner_kernel(%arg0: i32, %arg1: i32, %arg2: memref<1x16x128xf32, #tpu.memory_space<vmem>>, %arg3: memref<1x1x16xf32, #tpu.memory_space<vmem>>, %arg4: memref<1x16x1xf32, #tpu.memory_space<vmem>>, %arg5: memref<128x128xf32, #tpu.memory_space<vmem>>, %arg6: memref<1x128xf32, #tpu.memory_space<vmem>>, %arg7: memref<128x128xf32, #tpu.memory_space<vmem>>, %arg8: memref<1x128xf32, #tpu.memory_space<vmem>>, %arg9: memref<1x128x512xf32, #tpu.memory_space<vmem>>, %arg10: memref<1x1x512xf32, #tpu.memory_space<vmem>>, %arg11: memref<16x128xf32, #tpu.memory_space<vmem>>, %arg12: memref<16x128xf32, #tpu.memory_space<vmem>>, %arg13: memref<1x16x128xf32, #tpu.memory_space<vmem>>, %arg14: memref<1x4x16x16xf32, #tpu.memory_space<vmem>>, %arg15: memref<16x128xf32, #tpu.memory_space<vmem>>) attributes {dimension_semantics = [#tpu.dimension_semantics<parallel>, #tpu.dimension_semantics<arbitrary>], iteration_bounds = array<i64: 2, 5>, scalar_prefetch = 0 : i64, scratch_operands = 1 : i64, tpu.core_type = #tpu.core_type<tc>, window_params = [{transform_indices = @transform_0, window_bounds = array<i64: 1, 16, 128>}, {transform_indices = @transform_1, window_bounds = array<i64: 1, 1, 16>}, {transform_indices = @transform_2, window_bounds = array<i64: 1, 16, 1>}, {pipeline_mode = #tpu.pipeline_mode<synchronous>, transform_indices = @transform_3, window_bounds = array<i64: 128, 128>}, {pipeline_mode = #tpu.pipeline_mode<synchronous>, transform_indices = @transform_4, window_bounds = array<i64: 1, 128>}, {pipeline_mode = #tpu.pipeline_mode<synchronous>, transform_indices = @transform_5, window_bounds = array<i64: 128, 128>}, {pipeline_mode = #tpu.pipeline_mode<synchronous>, transform_indices = @transform_6, window_bounds = array<i64: 1, 128>}, {transform_indices = @transform_7, window_bounds = array<i64: 1, 128, 512>}, {transform_indices = @transform_8, window_bounds = array<i64: 1, 1, 512>}, {pipeline_mode = #tpu.pipeline_mode<synchronous>, transform_indices = @transform_9, window_bounds = array<i64: 16, 128>}, {pipeline_mode = #tpu.pipeline_mode<synchronous>, transform_indices = @transform_10, window_bounds = array<i64: 16, 128>}, {transform_indices = @transform_11, window_bounds = array<i64: 1, 16, 128>}, {transform_indices = @transform_12, window_bounds = array<i64: 1, 4, 16, 16>}]} {
    %c0_i32 = arith.constant 0 : i32
    %0 = arith.cmpi eq, %arg1, %c0_i32 : i32
    %1 = arith.extui %0 : i1 to i32
    %c0_i32_0 = arith.constant 0 : i32
    %2 = arith.cmpi ne, %1, %c0_i32_0 : i32
    scf.if %2 {
      %c0_40 = arith.constant 0 : index
      %c0_41 = arith.constant 0 : index
      %c0_42 = arith.constant 0 : index
      %68 = vector.load %arg2[%c0_40, %c0_41, %c0_42] : memref<1x16x128xf32, #tpu.memory_space<vmem>>, vector<1x16x128xf32>
      %69 = vector.shape_cast %68 : vector<1x16x128xf32> to vector<16x128xf32>
      %c0_43 = arith.constant 0 : index
      %c0_44 = arith.constant 0 : index
      %70 = vector.load %arg5[%c0_43, %c0_44] : memref<128x128xf32, #tpu.memory_space<vmem>>, vector<128x128xf32>
      %cst_45 = arith.constant dense<0.000000e+00> : vector<16x128xf32>
      %71 = tpu.matmul %69, %70, %cst_45 {dimension_numbers = #tpu.dot_dimension_numbers<[1], [0], [0], [1], [0, 0, 1, 1], [], []>} : vector<16x128xf32>, vector<128x128xf32>, vector<16x128xf32> -> vector<16x128xf32>
      %c0_46 = arith.constant 0 : index
      %c0_47 = arith.constant 0 : index
      %72 = vector.load %arg6[%c0_46, %c0_47] : memref<1x128xf32, #tpu.memory_space<vmem>>, vector<1x128xf32>
      %73 = vector.broadcast %72 : vector<1x128xf32> to vector<16x128xf32>
      %74 = arith.addf %71, %73 : vector<16x128xf32>
      %cst_48 = arith.constant 0.000000e+00 : f32
      %75 = vector.broadcast %cst_48 : f32 to vector<16x128xf32>
      %76 = arith.maximumf %74, %75 : vector<16x128xf32>
      %c0_49 = arith.constant 0 : index
      %c0_50 = arith.constant 0 : index
      %77 = vector.load %arg15[%c0_49, %c0_50] : memref<16x128xf32, #tpu.memory_space<vmem>>, vector<16x128xf32>
      tpu.vector_store %arg15[%c0_49, %c0_50], %76 {strides = array<i32>} : memref<16x128xf32, #tpu.memory_space<vmem>>, vector<16x128xf32>,
      %c0_51 = arith.constant 0 : index
      %c0_52 = arith.constant 0 : index
      %78 = vector.load %arg7[%c0_51, %c0_52] : memref<128x128xf32, #tpu.memory_space<vmem>>, vector<128x128xf32>
      %cst_53 = arith.constant dense<0.000000e+00> : vector<16x128xf32>
      %79 = tpu.matmul %76, %78, %cst_53 {dimension_numbers = #tpu.dot_dimension_numbers<[1], [0], [0], [1], [0, 0, 1, 1], [], []>} : vector<16x128xf32>, vector<128x128xf32>, vector<16x128xf32> -> vector<16x128xf32>
      %c0_54 = arith.constant 0 : index
      %c0_55 = arith.constant 0 : index
      %80 = vector.load %arg8[%c0_54, %c0_55] : memref<1x128xf32, #tpu.memory_space<vmem>>, vector<1x128xf32>
      %81 = vector.broadcast %80 : vector<1x128xf32> to vector<16x128xf32>
      %82 = arith.addf %79, %81 : vector<16x128xf32>
      %c0_56 = arith.constant 0 : index
      %c0_57 = arith.constant 0 : index
      %c0_58 = arith.constant 0 : index
      %83 = vector.load %arg13[%c0_56, %c0_57, %c0_58] : memref<1x16x128xf32, #tpu.memory_space<vmem>>, vector<1x16x128xf32>
      %84 = vector.shape_cast %83 : vector<1x16x128xf32> to vector<16x128xf32>
      %85 = vector.shape_cast %82 : vector<16x128xf32> to vector<1x16x128xf32>
      tpu.vector_store %arg13[%c0_56, %c0_57, %c0_58], %85 {strides = array<i32>} : memref<1x16x128xf32, #tpu.memory_space<vmem>>, vector<1x16x128xf32>,
    } else {
    }
    %c0 = arith.constant 0 : index
    %c0_1 = arith.constant 0 : index
    %3 = vector.load %arg15[%c0, %c0_1] : memref<16x128xf32, #tpu.memory_space<vmem>>, vector<16x128xf32>
    %c0_2 = arith.constant 0 : index
    %c0_3 = arith.constant 0 : index
    %c0_4 = arith.constant 0 : index
    %4 = vector.load %arg9[%c0_2, %c0_3, %c0_4] : memref<1x128x512xf32, #tpu.memory_space<vmem>>, vector<1x128x512xf32>
    %5 = vector.shape_cast %4 : vector<1x128x512xf32> to vector<128x512xf32>
    %cst = arith.constant dense<0.000000e+00> : vector<16x512xf32>
    %6 = tpu.matmul %3, %5, %cst {dimension_numbers = #tpu.dot_dimension_numbers<[1], [0], [0], [1], [0, 0, 1, 1], [], []>} : vector<16x128xf32>, vector<128x512xf32>, vector<16x512xf32> -> vector<16x512xf32>
    %c0_5 = arith.constant 0 : index
    %c0_6 = arith.constant 0 : index
    %c0_7 = arith.constant 0 : index
    %7 = vector.load %arg10[%c0_5, %c0_6, %c0_7] : memref<1x1x512xf32, #tpu.memory_space<vmem>>, vector<1x1x512xf32>
    %8 = vector.shape_cast %7 : vector<1x1x512xf32> to vector<1x512xf32>
    %9 = vector.broadcast %8 : vector<1x512xf32> to vector<16x512xf32>
    %10 = arith.addf %6, %9 : vector<16x512xf32>
    %c0_8 = arith.constant 0 : index
    %c0_9 = arith.constant 0 : index
    %11 = vector.load %arg11[%c0_8, %c0_9] : memref<16x128xf32, #tpu.memory_space<vmem>>, vector<16x128xf32>
    %c0_10 = arith.constant 0 : index
    %c0_11 = arith.constant 0 : index
    %12 = vector.load %arg12[%c0_10, %c0_11] : memref<16x128xf32, #tpu.memory_space<vmem>>, vector<16x128xf32>
    %13 = vector.extract_strided_slice %10 {offsets = [0, 0], sizes = [16, 128], strides = [1, 1]} : vector<16x512xf32> to vector<16x128xf32>
    %14 = arith.mulf %13, %11 : vector<16x128xf32>
    %15 = vector.extract_strided_slice %10 {offsets = [0, 128], sizes = [16, 128], strides = [1, 1]} : vector<16x512xf32> to vector<16x128xf32>
    %16 = arith.mulf %15, %12 : vector<16x128xf32>
    %17 = arith.addf %14, %16 : vector<16x128xf32>
    %18 = vector.extract_strided_slice %10 {offsets = [0, 256], sizes = [16, 128], strides = [1, 1]} : vector<16x512xf32> to vector<16x128xf32>
    %19 = arith.mulf %18, %11 : vector<16x128xf32>
    %20 = vector.extract_strided_slice %10 {offsets = [0, 384], sizes = [16, 128], strides = [1, 1]} : vector<16x512xf32> to vector<16x128xf32>
    %21 = arith.mulf %20, %12 : vector<16x128xf32>
    %22 = arith.addf %19, %21 : vector<16x128xf32>
    %c0_12 = arith.constant 0 : index
    %c0_13 = arith.constant 0 : index
    %c0_14 = arith.constant 0 : index
    %23 = vector.load %arg4[%c0_12, %c0_13, %c0_14] : memref<1x16x1xf32, #tpu.memory_space<vmem>>, vector<1x16x1xf32>
    %24 = vector.shape_cast %23 : vector<1x16x1xf32> to vector<16x1xf32>
    %c0_15 = arith.constant 0 : index
    %c0_16 = arith.constant 0 : index
    %c0_17 = arith.constant 0 : index
    %25 = vector.load %arg3[%c0_15, %c0_16, %c0_17] : memref<1x1x16xf32, #tpu.memory_space<vmem>>, vector<1x1x16xf32>
    %26 = vector.shape_cast %25 : vector<1x1x16xf32> to vector<1x16xf32>
    %27 = vector.broadcast %24 : vector<16x1xf32> to vector<16x16xf32>
    %28 = vector.broadcast %26 : vector<1x16xf32> to vector<16x16xf32>
    %29 = arith.mulf %27, %28 : vector<16x16xf32>
    %30 = tpu.iota {dimensions = array<i32: 0>} : vector<16x16xi32>
    %31 = tpu.iota {dimensions = array<i32: 1>} : vector<16x16xi32>
    %cst_18 = arith.constant 0.000000e+00 : f32
    %32 = vector.broadcast %cst_18 : f32 to vector<16x16xf32>
    %33 = arith.cmpf ogt, %29, %32 : vector<16x16xf32>
    %34 = arith.cmpi sle, %30, %31 : vector<16x16xi32>
    %35 = arith.andi %33, %34 : vector<16x16xi1>
    %36 = vector.extract_strided_slice %17 {offsets = [0, 0], sizes = [16, 32], strides = [1, 1]} : vector<16x128xf32> to vector<16x32xf32>
    %37 = vector.extract_strided_slice %22 {offsets = [0, 0], sizes = [16, 32], strides = [1, 1]} : vector<16x128xf32> to vector<16x32xf32>
    %cst_19 = arith.constant dense<0.000000e+00> : vector<16x16xf32>
    %38 = tpu.matmul %36, %37, %cst_19 {dimension_numbers = #tpu.dot_dimension_numbers<[1], [1], [0], [0], [0, 0, 1, 0], [], []>} : vector<16x32xf32>, vector<16x32xf32>, vector<16x16xf32> -> vector<16x16xf32>
    %cst_20 = arith.constant -9.99999995E+11 : f32
    %39 = vector.broadcast %cst_20 : f32 to vector<16x16xf32>
    %40 = arith.select %35, %38, %39 : vector<16x16xi1>, vector<16x16xf32>
    %c0_21 = arith.constant 0 : index
    %c0_22 = arith.constant 0 : index
    %c0_23 = arith.constant 0 : index
    %c0_24 = arith.constant 0 : index
    %41 = vector.load %arg14[%c0_21, %c0_22, %c0_23, %c0_24] : memref<1x4x16x16xf32, #tpu.memory_space<vmem>>, vector<1x1x16x16xf32>
    %42 = vector.shape_cast %41 : vector<1x1x16x16xf32> to vector<16x16xf32>
    %43 = vector.shape_cast %40 : vector<16x16xf32> to vector<1x1x16x16xf32>
    tpu.vector_store %arg14[%c0_21, %c0_22, %c0_23, %c0_24], %43 {strides = array<i32>} : memref<1x4x16x16xf32, #tpu.memory_space<vmem>>, vector<1x1x16x16xf32>,
    %44 = vector.extract_strided_slice %17 {offsets = [0, 32], sizes = [16, 32], strides = [1, 1]} : vector<16x128xf32> to vector<16x32xf32>
    %45 = vector.extract_strided_slice %22 {offsets = [0, 32], sizes = [16, 32], strides = [1, 1]} : vector<16x128xf32> to vector<16x32xf32>
    %cst_25 = arith.constant dense<0.000000e+00> : vector<16x16xf32>
    %46 = tpu.matmul %44, %45, %cst_25 {dimension_numbers = #tpu.dot_dimension_numbers<[1], [1], [0], [0], [0, 0, 1, 0], [], []>} : vector<16x32xf32>, vector<16x32xf32>, vector<16x16xf32> -> vector<16x16xf32>
    %cst_26 = arith.constant -9.99999995E+11 : f32
    %47 = vector.broadcast %cst_26 : f32 to vector<16x16xf32>
    %48 = arith.select %35, %46, %47 : vector<16x16xi1>, vector<16x16xf32>
    %c0_27 = arith.constant 0 : index
    %c1 = arith.constant 1 : index
    %c0_28 = arith.constant 0 : index
    %c0_29 = arith.constant 0 : index
    %49 = vector.load %arg14[%c0_27, %c1, %c0_28, %c0_29] : memref<1x4x16x16xf32, #tpu.memory_space<vmem>>, vector<1x1x16x16xf32>
    %50 = vector.shape_cast %49 : vector<1x1x16x16xf32> to vector<16x16xf32>
    %51 = vector.shape_cast %48 : vector<16x16xf32> to vector<1x1x16x16xf32>
    tpu.vector_store %arg14[%c0_27, %c1, %c0_28, %c0_29], %51 {strides = array<i32>} : memref<1x4x16x16xf32, #tpu.memory_space<vmem>>, vector<1x1x16x16xf32>,
    %52 = vector.extract_strided_slice %17 {offsets = [0, 64], sizes = [16, 32], strides = [1, 1]} : vector<16x128xf32> to vector<16x32xf32>
    %53 = vector.extract_strided_slice %22 {offsets = [0, 64], sizes = [16, 32], strides = [1, 1]} : vector<16x128xf32> to vector<16x32xf32>
    %cst_30 = arith.constant dense<0.000000e+00> : vector<16x16xf32>
    %54 = tpu.matmul %52, %53, %cst_30 {dimension_numbers = #tpu.dot_dimension_numbers<[1], [1], [0], [0], [0, 0, 1, 0], [], []>} : vector<16x32xf32>, vector<16x32xf32>, vector<16x16xf32> -> vector<16x16xf32>
    %cst_31 = arith.constant -9.99999995E+11 : f32
    %55 = vector.broadcast %cst_31 : f32 to vector<16x16xf32>
    %56 = arith.select %35, %54, %55 : vector<16x16xi1>, vector<16x16xf32>
    %c0_32 = arith.constant 0 : index
    %c2 = arith.constant 2 : index
    %c0_33 = arith.constant 0 : index
    %c0_34 = arith.constant 0 : index
    %57 = vector.load %arg14[%c0_32, %c2, %c0_33, %c0_34] : memref<1x4x16x16xf32, #tpu.memory_space<vmem>>, vector<1x1x16x16xf32>
    %58 = vector.shape_cast %57 : vector<1x1x16x16xf32> to vector<16x16xf32>
    %59 = vector.shape_cast %56 : vector<16x16xf32> to vector<1x1x16x16xf32>
    tpu.vector_store %arg14[%c0_32, %c2, %c0_33, %c0_34], %59 {strides = array<i32>} : memref<1x4x16x16xf32, #tpu.memory_space<vmem>>, vector<1x1x16x16xf32>,
    %60 = vector.extract_strided_slice %17 {offsets = [0, 96], sizes = [16, 32], strides = [1, 1]} : vector<16x128xf32> to vector<16x32xf32>
    %61 = vector.extract_strided_slice %22 {offsets = [0, 96], sizes = [16, 32], strides = [1, 1]} : vector<16x128xf32> to vector<16x32xf32>
    %cst_35 = arith.constant dense<0.000000e+00> : vector<16x16xf32>
    %62 = tpu.matmul %60, %61, %cst_35 {dimension_numbers = #tpu.dot_dimension_numbers<[1], [1], [0], [0], [0, 0, 1, 0], [], []>} : vector<16x32xf32>, vector<16x32xf32>, vector<16x16xf32> -> vector<16x16xf32>
    %cst_36 = arith.constant -9.99999995E+11 : f32
    %63 = vector.broadcast %cst_36 : f32 to vector<16x16xf32>
    %64 = arith.select %35, %62, %63 : vector<16x16xi1>, vector<16x16xf32>
    %c0_37 = arith.constant 0 : index
    %c3 = arith.constant 3 : index
    %c0_38 = arith.constant 0 : index
    %c0_39 = arith.constant 0 : index
    %65 = vector.load %arg14[%c0_37, %c3, %c0_38, %c0_39] : memref<1x4x16x16xf32, #tpu.memory_space<vmem>>, vector<1x1x16x16xf32>
    %66 = vector.shape_cast %65 : vector<1x1x16x16xf32> to vector<16x16xf32>
    %67 = vector.shape_cast %64 : vector<16x16xf32> to vector<1x1x16x16xf32>
    tpu.vector_store %arg14[%c0_37, %c3, %c0_38, %c0_39], %67 {strides = array<i32>} : memref<1x4x16x16xf32, #tpu.memory_space<vmem>>, vector<1x1x16x16xf32>,
    return
  }
  func.func @transform_0(%arg0: i32, %arg1: i32) -> (i32, i32, i32) {
    %c0_i32 = arith.constant 0 : i32
    %c0_i32_0 = arith.constant 0 : i32
    %c0_i32_1 = arith.constant 0 : i32
    return %arg0, %c0_i32, %c0_i32_0 : i32, i32, i32
  }
  func.func @transform_1(%arg0: i32, %arg1: i32) -> (i32, i32, i32) {
    %c0_i32 = arith.constant 0 : i32
    %c0_i32_0 = arith.constant 0 : i32
    %c0_i32_1 = arith.constant 0 : i32
    return %arg0, %c0_i32, %c0_i32_0 : i32, i32, i32
  }
  func.func @transform_2(%arg0: i32, %arg1: i32) -> (i32, i32, i32) {
    %c0_i32 = arith.constant 0 : i32
    %c0_i32_0 = arith.constant 0 : i32
    %c0_i32_1 = arith.constant 0 : i32
    return %arg0, %c0_i32, %c0_i32_0 : i32, i32, i32
  }
  func.func @transform_3(%arg0: i32, %arg1: i32) -> (i32, i32) {
    %c0_i32 = arith.constant 0 : i32
    %c0_i32_0 = arith.constant 0 : i32
    %c0_i32_1 = arith.constant 0 : i32
    return %c0_i32, %c0_i32_0 : i32, i32
  }
  func.func @transform_4(%arg0: i32, %arg1: i32) -> (i32, i32) {
    %c0_i32 = arith.constant 0 : i32
    %c0_i32_0 = arith.constant 0 : i32
    %c0_i32_1 = arith.constant 0 : i32
    return %c0_i32, %c0_i32_0 : i32, i32
  }
  func.func @transform_5(%arg0: i32, %arg1: i32) -> (i32, i32) {
    %c0_i32 = arith.constant 0 : i32
    %c0_i32_0 = arith.constant 0 : i32
    %c0_i32_1 = arith.constant 0 : i32
    return %c0_i32, %c0_i32_0 : i32, i32
  }
  func.func @transform_6(%arg0: i32, %arg1: i32) -> (i32, i32) {
    %c0_i32 = arith.constant 0 : i32
    %c0_i32_0 = arith.constant 0 : i32
    %c0_i32_1 = arith.constant 0 : i32
    return %c0_i32, %c0_i32_0 : i32, i32
  }
  func.func @transform_7(%arg0: i32, %arg1: i32) -> (i32, i32, i32) {
    %c0_i32 = arith.constant 0 : i32
    %c0_i32_0 = arith.constant 0 : i32
    %c0_i32_1 = arith.constant 0 : i32
    return %arg1, %c0_i32, %c0_i32_0 : i32, i32, i32
  }
  func.func @transform_8(%arg0: i32, %arg1: i32) -> (i32, i32, i32) {
    %c0_i32 = arith.constant 0 : i32
    %c0_i32_0 = arith.constant 0 : i32
    %c0_i32_1 = arith.constant 0 : i32
    return %arg1, %c0_i32, %c0_i32_0 : i32, i32, i32
  }
  func.func @transform_9(%arg0: i32, %arg1: i32) -> (i32, i32) {
    %c0_i32 = arith.constant 0 : i32
    %c0_i32_0 = arith.constant 0 : i32
    %c0_i32_1 = arith.constant 0 : i32
    return %c0_i32, %c0_i32_0 : i32, i32
  }
  func.func @transform_10(%arg0: i32, %arg1: i32) -> (i32, i32) {
    %c0_i32 = arith.constant 0 : i32
    %c0_i32_0 = arith.constant 0 : i32
    %c0_i32_1 = arith.constant 0 : i32
    return %c0_i32, %c0_i32_0 : i32, i32
  }
  func.func @transform_11(%arg0: i32, %arg1: i32) -> (i32, i32, i32) {
    %c0_i32 = arith.constant 0 : i32
    %c0_i32_0 = arith.constant 0 : i32
    %c0_i32_1 = arith.constant 0 : i32
    return %arg0, %c0_i32, %c0_i32_0 : i32, i32, i32
  }
  func.func @transform_12(%arg0: i32, %arg1: i32) -> (i32, i32, i32, i32) {
    %c0_i32 = arith.constant 0 : i32
    %c0_i32_0 = arith.constant 0 : i32
    %c0_i32_1 = arith.constant 0 : i32
    return %arg0, %arg1, %c0_i32, %c0_i32_0 : i32, i32, i32, i32
  }
}

</mosaic_0001>

<llo_original>
// kernel: tpu_custom_call.1
$region0: #{tpu_custom_call.1}
  #allocation0 [shape = 'u32[]', space=smem, size = 0x4, offset = 0x4, fixed_abs, tag = 'smem constant byte address 0x4 - core index']
  #allocation1 [shape = 'u32[144,128]{1,0:T(1,128)}', space=vmem, size = 0x12000, scoped, tag = 'internal scratch']
  #allocation2 [shape = 'f32[16,128]{1,0:T(8,128)}', space=vmem, size = 0x2000, scoped, tag = 'scratch operand']
  %s0 = inlined_call_operand.hbm [shape: f32[2,16,128], index: 0, kind: input, shape index: {}]
  %s1 = inlined_call_operand.hbm [shape: f32[2,1,16], index: 1, kind: input, shape index: {}]
  %s2 = inlined_call_operand.vmem [shape: f32[2,16,1], index: 2, kind: input, shape index: {}]
  %s3 = inlined_call_operand.hbm [shape: f32[128,128], index: 3, kind: input, shape index: {}]
  %s4 = inlined_call_operand.hbm [shape: f32[1,128], index: 4, kind: input, shape index: {}]
  %s5 = inlined_call_operand.hbm [shape: f32[128,128], index: 5, kind: input, shape index: {}]
  %s6 = inlined_call_operand.hbm [shape: f32[1,128], index: 6, kind: input, shape index: {}]
  %s7 = inlined_call_operand.hbm [shape: f32[5,128,512], index: 7, kind: input, shape index: {}]
  %s8 = inlined_call_operand.hbm [shape: f32[5,1,512], index: 8, kind: input, shape index: {}]
  %s9 = inlined_call_operand.hbm [shape: f32[16,128], index: 9, kind: input, shape index: {}]
  %s10 = inlined_call_operand.hbm [shape: f32[16,128], index: 10, kind: input, shape index: {}]
  %s11 = inlined_call_operand.hbm [shape: f32[2,16,128], index: 11, kind: output, shape index: {0}]
  %s12 = inlined_call_operand.vmem [shape: f32[2,20,16,16], index: 12, kind: output, shape index: {1}]
  %13 = xla_tuple %s11, %s12
  %s14 = sld [smem:[#allocation0]]
  $region129: #{tpu_custom_call.1} parent=0
    _
  %s16 = ssub.s32 1, %s14
  %s17 = scalar_select 0, %s16, %s14
  $region1: #{tpu_custom_call.1} parent=0
    #allocation3 [shape = 'u8[16384]{0}', space=vmem, size = 0x4000, scoped, tag = 'input window, operand 0']
    #allocation4 [shape = 's32[2]{0}', space=sflag, size = 0x8, scoped, tag = 'scoped memory for tpu_custom_call.1']
    #allocation5 [shape = 's32[2]{0}', space=sflag, size = 0x8, scoped, tag = 'scoped memory for tpu_custom_call.1']
    #allocation6 [shape = 'u8[1024]{0}', space=vmem, size = 0x400, scoped, tag = 'input window, operand 1']
    #allocation7 [shape = 's32[2]{0}', space=sflag, size = 0x8, scoped, tag = 'scoped memory for tpu_custom_call.1']
    #allocation8 [shape = 'u8[65536]{0}', space=vmem, size = 0x10000, scoped, tag = 'input window, operand 3, single buffered']
    #allocation9 [shape = 'u8[512]{0}', space=vmem, size = 0x400, scoped, tag = 'input window, operand 4, single buffered']
    #allocation10 [shape = 's32[1]{0}', space=sflag, size = 0x4, scoped, tag = 'scoped memory for tpu_custom_call.1']
    #allocation11 [shape = 'u8[65536]{0}', space=vmem, size = 0x10000, scoped, tag = 'input window, operand 5, single buffered']
    #allocation12 [shape = 'u8[512]{0}', space=vmem, size = 0x400, scoped, tag = 'input window, operand 6, single buffered']
    #allocation13 [shape = 's32[1]{0}', space=sflag, size = 0x4, scoped, tag = 'scoped memory for tpu_custom_call.1']
    #allocation14 [shape = 'u8[524288]{0}', space=vmem, size = 0x80000, scoped, tag = 'input window, operand 7']
    #allocation15 [shape = 'u8[4096]{0}', space=vmem, size = 0x1000, scoped, tag = 'input window, operand 8']
    #allocation16 [shape = 'u8[8192]{0}', space=vmem, size = 0x2000, scoped, tag = 'input window, operand 9, single buffered']
    #allocation17 [shape = 'u8[8192]{0}', space=vmem, size = 0x2000, scoped, tag = 'input window, operand 10, single buffered']
    #allocation18 [shape = 'u8[16384]{0}', space=vmem, size = 0x4000, scoped, tag = 'output window, operand 0']
    %18 = vsyncpa [#allocation4], 0
    %s19 = scalar_lea.sflag [#allocation4], 1
    %20 = vsyncpa %s19, 0
    %21 = vsyncpa [#allocation7], 0
    %s22 = scalar_lea.sflag [#allocation7], 1
    %23 = vsyncpa %s22, 0
    %24 = vsyncpa [#allocation10], 0
    %25 = vsyncpa [#allocation13], 0
    %26 = vsyncpa [#allocation5], 0
    %s27 = scalar_lea.sflag [#allocation5], 1
    %28 = vsyncpa %s27, 0
    loop: start=0, step=1, limit=12
    $region2: #{tpu_custom_call.1} parent=1 // loop_pre_header
      _
    $region3: #{tpu_custom_call.1} parent=1 // loop_header
      %s30 = sphi 0, %s34
      %p31 = scmp.ge.s32.totalorder %s30, 12
      %s37 = sphi 0, %s49
      %s38 = sphi 0, %s45
      %s39 = sphi 0, %s37
      %s40 = sphi 0, %s38
      %s41 = sphi 0, %s39
      %s42 = sphi 0, %s40
      %s52 = sphi 0, %s54
      %s55 = sphi 0, %s52
      %s56 = sphi 0, %s55
      %s72 = sphi 0, %s56
      %s78 = sphi 0, %s80
      %s81 = sphi 0, %s78
      %s82 = sphi 0, %s81
      %s98 = sphi 0, %s82
      %s104 = sphi 0, %s106
      %s107 = sphi 0, %s104
      %s108 = sphi 0, %s107
      %s124 = sphi 0, %s108
      %s128 = sphi 0, %s128
      %s130 = sphi 0, %s128
      %s131 = sphi 0, %s130
      %s145 = sphi 0, %s131
      %s149 = sphi 0, %s149
      %s151 = sphi 0, %s149
      %s152 = sphi 0, %s151
      %s166 = sphi 0, %s152
      %s170 = sphi 0, %s170
      %s172 = sphi 0, %s170
      %s173 = sphi 0, %s172
      %s187 = sphi 0, %s173
      %s191 = sphi 0, %s191
      %s193 = sphi 0, %s191
      %s194 = sphi 0, %s193
      %s208 = sphi 0, %s194
      %s214 = sphi 0, %s216
      %s217 = sphi 0, %s214
      %s218 = sphi 0, %s217
      %s234 = sphi 0, %s218
      %s240 = sphi 0, %s242
      %s243 = sphi 0, %s240
      %s244 = sphi 0, %s243
      %s260 = sphi 0, %s244
      %s264 = sphi 0, %s264
      %s266 = sphi 0, %s264
      %s267 = sphi 0, %s266
      %s281 = sphi 0, %s267
      %s285 = sphi 0, %s285
      %s287 = sphi 0, %s285
      %s288 = sphi 0, %s287
      %s302 = sphi 0, %s288
      %s308 = sphi 0, %s310
      %s311 = sphi 0, %s308
      %s312 = sphi 0, %s311
      %s328 = sphi 0, %s312
      %s336 = sphi 0, %s338
      %s339 = sphi 0, %s336
      %s340 = sphi 0, %s339
      %s356 = sphi 0, %s340
    $region4: #{tpu_custom_call.1} parent=1 // loop_header_branch
      %33 = sbr.rel (%p31) target = $region8
    $region5: #{tpu_custom_call.1} parent=1 // loop_body
      %s35 = ssub.s32 %s30, 1
      %s36 = ssub.s32 %s30, 2
      %s43 = sadd.s32 1, %s38
      %p44 = scmp.ge.s32.totalorder %s43, 5
      %s45 = scalar_select %p44, 0, %s43
      %s46 = sadd.s32 1, %s37
      %s47 = scalar_select %p44, %s46, %s37
      %p48 = scmp.ge.s32.totalorder %s47, 2
      %s49 = scalar_select %p48, 0, %s47
      %s50 = ssub.s32 %s37, %s49
      %p51 = scmp.eq.s32.totalorder %s50, 0
      %s53 = sadd.s32 %s52, 1
      %s54 = scalar_select %p51, %s52, %s53
      %p57 = pneg %p51
      %p58 = scmp.eq.s32.totalorder %s30, 9
      %p59 = por %p57, %p58
      %p60 = scmp.ne.s32.totalorder %s52, %s55
      %p61 = scmp.eq.s32.totalorder %s30, 0
      %p62 = por %p60, %p61
      %p63 = scmp.ne.s32.totalorder %s52, %s55
      %p64 = scmp.eq.s32.totalorder %s35, 9
      %p65 = por %p63, %p64
      %p66 = scmp.ne.s32.totalorder %s55, %s56
      %p67 = scmp.eq.s32.totalorder %s35, 0
      %p68 = por %p66, %p67
      %p69 = scmp.ne.s32.totalorder %s55, %s56
      %p70 = scmp.eq.s32.totalorder %s36, 9
      %p71 = por %p69, %p70
      %p73 = scmp.ne.s32.totalorder %s56, %s72
      %p74 = scmp.eq.s32.totalorder %s36, 0
      %p75 = por %p73, %p74
      %s76 = ssub.s32 %s37, %s49
      %p77 = scmp.eq.s32.totalorder %s76, 0
      %s79 = sadd.s32 %s78, 1
      %s80 = scalar_select %p77, %s78, %s79
      %p83 = pneg %p77
      %p84 = scmp.eq.s32.totalorder %s30, 9
      %p85 = por %p83, %p84
      %p86 = scmp.ne.s32.totalorder %s78, %s81
      %p87 = scmp.eq.s32.totalorder %s30, 0
      %p88 = por %p86, %p87
      %p89 = scmp.ne.s32.totalorder %s78, %s81
      %p90 = scmp.eq.s32.totalorder %s35, 9
      %p91 = por %p89, %p90
      %p92 = scmp.ne.s32.totalorder %s81, %s82
      %p93 = scmp.eq.s32.totalorder %s35, 0
      %p94 = por %p92, %p93
      %p95 = scmp.ne.s32.totalorder %s81, %s82
      %p96 = scmp.eq.s32.totalorder %s36, 9
      %p97 = por %p95, %p96
      %p99 = scmp.ne.s32.totalorder %s82, %s98
      %p100 = scmp.eq.s32.totalorder %s36, 0
      %p101 = por %p99, %p100
      %s102 = ssub.s32 %s37, %s49
      %p103 = scmp.eq.s32.totalorder %s102, 0
      %s105 = sadd.s32 %s104, 1
      %s106 = scalar_select %p103, %s104, %s105
      %p109 = pneg %p103
      %p110 = scmp.eq.s32.totalorder %s30, 9
      %p111 = por %p109, %p110
      %p112 = scmp.ne.s32.totalorder %s104, %s107
      %p113 = scmp.eq.s32.totalorder %s30, 0
      %p114 = por %p112, %p113
      %p115 = scmp.ne.s32.totalorder %s104, %s107
      %p116 = scmp.eq.s32.totalorder %s35, 9
      %p117 = por %p115, %p116
      %p118 = scmp.ne.s32.totalorder %s107, %s108
      %p119 = scmp.eq.s32.totalorder %s35, 0
      %p120 = por %p118, %p119
      %p121 = scmp.ne.s32.totalorder %s107, %s108
      %p122 = scmp.eq.s32.totalorder %s36, 9
      %p123 = por %p121, %p122
      %p125 = scmp.ne.s32.totalorder %s108, %s124
      %p126 = scmp.eq.s32.totalorder %s36, 0
      %p127 = por %p125, %p126
      %s129 = sadd.s32 %s128, 1
      %p132 = scmp.eq.s32.totalorder %s30, 9
      %p133 = scmp.ne.s32.totalorder %s128, %s130
      %p134 = scmp.eq.s32.totalorder %s30, 0
      %p135 = por %p133, %p134
      %p136 = scmp.ne.s32.totalorder %s128, %s130
      %p137 = scmp.eq.s32.totalorder %s35, 9
      %p138 = por %p136, %p137
      %p139 = scmp.ne.s32.totalorder %s130, %s131
      %p140 = scmp.eq.s32.totalorder %s35, 0
      %p141 = por %p139, %p140
      %p142 = scmp.ne.s32.totalorder %s130, %s131
      %p143 = scmp.eq.s32.totalorder %s36, 9
      %p144 = por %p142, %p143
      %p146 = scmp.ne.s32.totalorder %s131, %s145
      %p147 = scmp.eq.s32.totalorder %s36, 0
      %p148 = por %p146, %p147
      %s150 = sadd.s32 %s149, 1
      %p153 = scmp.eq.s32.totalorder %s30, 9
      %p154 = scmp.ne.s32.totalorder %s149, %s151
      %p155 = scmp.eq.s32.totalorder %s30, 0
      %p156 = por %p154, %p155
      %p157 = scmp.ne.s32.totalorder %s149, %s151
      %p158 = scmp.eq.s32.totalorder %s35, 9
      %p159 = por %p157, %p158
      %p160 = scmp.ne.s32.totalorder %s151, %s152
      %p161 = scmp.eq.s32.totalorder %s35, 0
      %p162 = por %p160, %p161
      %p163 = scmp.ne.s32.totalorder %s151, %s152
      %p164 = scmp.eq.s32.totalorder %s36, 9
      %p165 = por %p163, %p164
      %p167 = scmp.ne.s32.totalorder %s152, %s166
      %p168 = scmp.eq.s32.totalorder %s36, 0
      %p169 = por %p167, %p168
      %s171 = sadd.s32 %s170, 1
      %p174 = scmp.eq.s32.totalorder %s30, 9
      %p175 = scmp.ne.s32.totalorder %s170, %s172
      %p176 = scmp.eq.s32.totalorder %s30, 0
      %p177 = por %p175, %p176
      %p178 = scmp.ne.s32.totalorder %s170, %s172
      %p179 = scmp.eq.s32.totalorder %s35, 9
      %p180 = por %p178, %p179
      %p181 = scmp.ne.s32.totalorder %s172, %s173
      %p182 = scmp.eq.s32.totalorder %s35, 0
      %p183 = por %p181, %p182
      %p184 = scmp.ne.s32.totalorder %s172, %s173
      %p185 = scmp.eq.s32.totalorder %s36, 9
      %p186 = por %p184, %p185
      %p188 = scmp.ne.s32.totalorder %s173, %s187
      %p189 = scmp.eq.s32.totalorder %s36, 0
      %p190 = por %p188, %p189
      %s192 = sadd.s32 %s191, 1
      %p195 = scmp.eq.s32.totalorder %s30, 9
      %p196 = scmp.ne.s32.totalorder %s191, %s193
      %p197 = scmp.eq.s32.totalorder %s30, 0
      %p198 = por %p196, %p197
      %p199 = scmp.ne.s32.totalorder %s191, %s193
      %p200 = scmp.eq.s32.totalorder %s35, 9
      %p201 = por %p199, %p200
      %p202 = scmp.ne.s32.totalorder %s193, %s194
      %p203 = scmp.eq.s32.totalorder %s35, 0
      %p204 = por %p202, %p203
      %p205 = scmp.ne.s32.totalorder %s193, %s194
      %p206 = scmp.eq.s32.totalorder %s36, 9
      %p207 = por %p205, %p206
      %p209 = scmp.ne.s32.totalorder %s194, %s208
      %p210 = scmp.eq.s32.totalorder %s36, 0
      %p211 = por %p209, %p210
      %s212 = ssub.s32 %s38, %s45
      %p213 = scmp.eq.s32.totalorder %s212, 0
      %s215 = sadd.s32 %s214, 1
      %s216 = scalar_select %p213, %s214, %s215
      %p219 = pneg %p213
      %p220 = scmp.eq.s32.totalorder %s30, 9
      %p221 = por %p219, %p220
      %p222 = scmp.ne.s32.totalorder %s214, %s217
      %p223 = scmp.eq.s32.totalorder %s30, 0
      %p224 = por %p222, %p223
      %p225 = scmp.ne.s32.totalorder %s214, %s217
      %p226 = scmp.eq.s32.totalorder %s35, 9
      %p227 = por %p225, %p226
      %p228 = scmp.ne.s32.totalorder %s217, %s218
      %p229 = scmp.eq.s32.totalorder %s35, 0
      %p230 = por %p228, %p229
      %p231 = scmp.ne.s32.totalorder %s217, %s218
      %p232 = scmp.eq.s32.totalorder %s36, 9
      %p233 = por %p231, %p232
      %p235 = scmp.ne.s32.totalorder %s218, %s234
      %p236 = scmp.eq.s32.totalorder %s36, 0
      %p237 = por %p235, %p236
      %s238 = ssub.s32 %s38, %s45
      %p239 = scmp.eq.s32.totalorder %s238, 0
      %s241 = sadd.s32 %s240, 1
      %s242 = scalar_select %p239, %s240, %s241
      %p245 = pneg %p239
      %p246 = scmp.eq.s32.totalorder %s30, 9
      %p247 = por %p245, %p246
      %p248 = scmp.ne.s32.totalorder %s240, %s243
      %p249 = scmp.eq.s32.totalorder %s30, 0
      %p250 = por %p248, %p249
      %p251 = scmp.ne.s32.totalorder %s240, %s243
      %p252 = scmp.eq.s32.totalorder %s35, 9
      %p253 = por %p251, %p252
      %p254 = scmp.ne.s32.totalorder %s243, %s244
      %p255 = scmp.eq.s32.totalorder %s35, 0
      %p256 = por %p254, %p255
      %p257 = scmp.ne.s32.totalorder %s243, %s244
      %p258 = scmp.eq.s32.totalorder %s36, 9
      %p259 = por %p257, %p258
      %p261 = scmp.ne.s32.totalorder %s244, %s260
      %p262 = scmp.eq.s32.totalorder %s36, 0
      %p263 = por %p261, %p262
      %s265 = sadd.s32 %s264, 1
      %p268 = scmp.eq.s32.totalorder %s30, 9
      %p269 = scmp.ne.s32.totalorder %s264, %s266
      %p270 = scmp.eq.s32.totalorder %s30, 0
      %p271 = por %p269, %p270
      %p272 = scmp.ne.s32.totalorder %s264, %s266
      %p273 = scmp.eq.s32.totalorder %s35, 9
      %p274 = por %p272, %p273
      %p275 = scmp.ne.s32.totalorder %s266, %s267
      %p276 = scmp.eq.s32.totalorder %s35, 0
      %p277 = por %p275, %p276
      %p278 = scmp.ne.s32.totalorder %s266, %s267
      %p279 = scmp.eq.s32.totalorder %s36, 9
      %p280 = por %p278, %p279
      %p282 = scmp.ne.s32.totalorder %s267, %s281
      %p283 = scmp.eq.s32.totalorder %s36, 0
      %p284 = por %p282, %p283
      %s286 = sadd.s32 %s285, 1
      %p289 = scmp.eq.s32.totalorder %s30, 9
      %p290 = scmp.ne.s32.totalorder %s285, %s287
      %p291 = scmp.eq.s32.totalorder %s30, 0
      %p292 = por %p290, %p291
      %p293 = scmp.ne.s32.totalorder %s285, %s287
      %p294 = scmp.eq.s32.totalorder %s35, 9
      %p295 = por %p293, %p294
      %p296 = scmp.ne.s32.totalorder %s287, %s288
      %p297 = scmp.eq.s32.totalorder %s35, 0
      %p298 = por %p296, %p297
      %p299 = scmp.ne.s32.totalorder %s287, %s288
      %p300 = scmp.eq.s32.totalorder %s36, 9
      %p301 = por %p299, %p300
      %p303 = scmp.ne.s32.totalorder %s288, %s302
      %p304 = scmp.eq.s32.totalorder %s36, 0
      %p305 = por %p303, %p304
      %s306 = ssub.s32 %s37, %s49
      %p307 = scmp.eq.s32.totalorder %s306, 0
      %s309 = sadd.s32 %s308, 1
      %s310 = scalar_select %p307, %s308, %s309
      %p313 = pneg %p307
      %p314 = scmp.eq.s32.totalorder %s30, 9
      %p315 = por %p313, %p314
      %p316 = scmp.ne.s32.totalorder %s308, %s311
      %p317 = scmp.eq.s32.totalorder %s30, 0
      %p318 = por %p316, %p317
      %p319 = scmp.ne.s32.totalorder %s308, %s311
      %p320 = scmp.eq.s32.totalorder %s35, 9
      %p321 = por %p319, %p320
      %p322 = scmp.ne.s32.totalorder %s311, %s312
      %p323 = scmp.eq.s32.totalorder %s35, 0
      %p324 = por %p322, %p323
      %p325 = scmp.ne.s32.totalorder %s311, %s312
      %p326 = scmp.eq.s32.totalorder %s36, 9
      %p327 = por %p325, %p326
      %p329 = scmp.ne.s32.totalorder %s312, %s328
      %p330 = scmp.eq.s32.totalorder %s36, 0
      %p331 = por %p329, %p330
      %s332 = ssub.s32 %s37, %s49
      %s333 = ssub.s32 %s38, %s45
      %s334 = sor.u32 %s332, %s333
      %p335 = scmp.eq.s32.totalorder %s334, 0
      %s337 = sadd.s32 %s336, 1
      %s338 = scalar_select %p335, %s336, %s337
      %p341 = pneg %p335
      %p342 = scmp.eq.s32.totalorder %s30, 9
      %p343 = por %p341, %p342
      %p344 = scmp.ne.s32.totalorder %s336, %s339
      %p345 = scmp.eq.s32.totalorder %s30, 0
      %p346 = por %p344, %p345
      %p347 = scmp.ne.s32.totalorder %s336, %s339
      %p348 = scmp.eq.s32.totalorder %s35, 9
      %p349 = por %p347, %p348
      %p350 = scmp.ne.s32.totalorder %s339, %s340
      %p351 = scmp.eq.s32.totalorder %s35, 0
      %p352 = por %p350, %p351
      %p353 = scmp.ne.s32.totalorder %s339, %s340
      %p354 = scmp.eq.s32.totalorder %s36, 9
      %p355 = por %p353, %p354
      %p357 = scmp.ne.s32.totalorder %s340, %s356
      %p358 = scmp.eq.s32.totalorder %s36, 0
      %p359 = por %p357, %p358
      %p360 = scmp.le.s32.totalorder 1, %s30
      %p361 = scmp.lt.s32.totalorder %s30, 11
      %p362 = pnand %p360, %p361
      %p363 = pneg %p362
      // Predicated region
      $region9: #{tpu_custom_call.1} parent=5 // pred_check
        _
      $region10: #{tpu_custom_call.1} parent=5 // pred_check_branch
        %365 = sbr.rel (%p362) target = $region12
      $region11: #{tpu_custom_call.1} parent=5 // pred_region
        %s366 = ssub.s32 %s30, 1
        // Predicated region
        $region13: #{tpu_custom_call.1} parent=11 // pred_check
          %p367 = pneg %p141
        $region14: #{tpu_custom_call.1} parent=11 // pred_check_branch
          %369 = sbr.rel (%p367) target = $region16
        $region15: #{tpu_custom_call.1} parent=11 // pred_region
          %s371 = ssub.s32 2048, 2048
          %372 = vsyncadd [#allocation7], %s371
          %s373 = sshll.u32 [#allocation8], 4
          %s374 = int_to_ptr.vmem [resolvable:$true] %s373
          %379 = dma.hbm_to_vmem [thread:$0]  %s3, 2048, %s374, [#allocation7], 128, 128, 8
        $region16: #{tpu_custom_call.1} parent=11 // pred_fallthru
          _
        // Predicated region
        $region17: #{tpu_custom_call.1} parent=11 // pred_check
          %p380 = pneg %p162
        $region18: #{tpu_custom_call.1} parent=11 // pred_check_branch
          %382 = sbr.rel (%p380) target = $region20
        $region19: #{tpu_custom_call.1} parent=11 // pred_region
          %s384 = ssub.s32 16, 16
          %385 = vsyncadd [#allocation10], %s384
          %s387 = sshll.u32 [#allocation9], 4
          %s388 = int_to_ptr.vmem [resolvable:$true] %s387
          %390 = dma.hbm_to_vmem [thread:$0]  %s4, 16, %s388, [#allocation10]
        $region20: #{tpu_custom_call.1} parent=11 // pred_fallthru
          _
        // Predicated region
        $region21: #{tpu_custom_call.1} parent=11 // pred_check
          %p391 = pneg %p183
        $region22: #{tpu_custom_call.1} parent=11 // pred_check_branch
          %393 = sbr.rel (%p391) target = $region24
        $region23: #{tpu_custom_call.1} parent=11 // pred_region
          %s395 = ssub.s32 2048, 2048
          %396 = vsyncadd [#allocation10], %s395
          %s397 = sshll.u32 [#allocation11], 4
          %s398 = int_to_ptr.vmem [resolvable:$true] %s397
          %403 = dma.hbm_to_vmem [thread:$0]  %s5, 2048, %s398, [#allocation10], 128, 128, 8
        $region24: #{tpu_custom_call.1} parent=11 // pred_fallthru
          _
        // Predicated region
        $region25: #{tpu_custom_call.1} parent=11 // pred_check
          %p404 = pneg %p204
        $region26: #{tpu_custom_call.1} parent=11 // pred_check_branch
          %406 = sbr.rel (%p404) target = $region28
        $region27: #{tpu_custom_call.1} parent=11 // pred_region
          %s408 = ssub.s32 16, 16
          %409 = vsyncadd [#allocation13], %s408
          %s411 = sshll.u32 [#allocation12], 4
          %s412 = int_to_ptr.vmem [resolvable:$true] %s411
          %414 = dma.hbm_to_vmem [thread:$0]  %s6, 16, %s412, [#allocation13]
        $region28: #{tpu_custom_call.1} parent=11 // pred_fallthru
          _
        // Predicated region
        $region29: #{tpu_custom_call.1} parent=11 // pred_check
          %p415 = pneg %p277
        $region30: #{tpu_custom_call.1} parent=11 // pred_check_branch
          %417 = sbr.rel (%p415) target = $region32
        $region31: #{tpu_custom_call.1} parent=11 // pred_region
          %s419 = ssub.s32 256, 256
          %420 = vsyncadd [#allocation10], %s419
          %s421 = sshll.u32 [#allocation16], 4
          %s422 = int_to_ptr.vmem [resolvable:$true] %s421
          %427 = dma.hbm_to_vmem [thread:$0]  %s9, 256, %s422, [#allocation10], 128, 128, 8
        $region32: #{tpu_custom_call.1} parent=11 // pred_fallthru
          _
        // Predicated region
        $region33: #{tpu_custom_call.1} parent=11 // pred_check
          %p428 = pneg %p298
        $region34: #{tpu_custom_call.1} parent=11 // pred_check_branch
          %430 = sbr.rel (%p428) target = $region36
        $region35: #{tpu_custom_call.1} parent=11 // pred_region
          %s432 = ssub.s32 256, 256
          %433 = vsyncadd [#allocation13], %s432
          %s434 = sshll.u32 [#allocation17], 4
          %s435 = int_to_ptr.vmem [resolvable:$true] %s434
          %440 = dma.hbm_to_vmem [thread:$0]  %s10, 256, %s435, [#allocation13], 128, 128, 8
        $region36: #{tpu_custom_call.1} parent=11 // pred_fallthru
          _
      $region12: #{tpu_custom_call.1} parent=5 // pred_fallthru
        _
      %p441 = scmp.lt.s32.totalorder %s30, 10
      // Predicated region
      $region37: #{tpu_custom_call.1} parent=5 // pred_check
        %p442 = pneg %p441
      $region38: #{tpu_custom_call.1} parent=5 // pred_check_branch
        %444 = sbr.rel (%p442) target = $region40
      $region39: #{tpu_custom_call.1} parent=5 // pred_region
        // Predicated region
        $region41: #{tpu_custom_call.1} parent=39 // pred_check
          %p445 = pneg %p62
        $region42: #{tpu_custom_call.1} parent=39 // pred_check_branch
          %447 = sbr.rel (%p445) target = $region44
        $region43: #{tpu_custom_call.1} parent=39 // pred_region
          %s448 = sand.u32 %s30, 1
          %s449 = scalar_lea.sflag [#allocation4], %s448
          %s450 = sand.u32 %s52, 1
          %s451 = smul.addr %s450, 16
          %s452 = scalar_lea.vmem [#allocation3], %s451
          %s454 = ssub.s32 256, 256
          %455 = vsyncadd %s449, %s454
          %s456 = smul.addr %s37, 2
          %s457 = smul.addr %s456, 128
          %s458 = scalar_lea.hbm %s0, %s457
          %s459 = sshll.u32 %s452, 4
          %s460 = int_to_ptr.vmem [resolvable:$true] %s459
          %465 = dma.hbm_to_vmem [thread:$0]  %s458, 256, %s460, %s449, 128, 128, 8
        $region44: #{tpu_custom_call.1} parent=39 // pred_fallthru
          _
        // Predicated region
        $region45: #{tpu_custom_call.1} parent=39 // pred_check
          %p466 = pneg %p88
        $region46: #{tpu_custom_call.1} parent=39 // pred_check_branch
          %468 = sbr.rel (%p466) target = $region48
        $region47: #{tpu_custom_call.1} parent=39 // pred_region
          %s469 = sand.u32 %s30, 1
          %s470 = scalar_lea.sflag [#allocation7], %s469
          %s471 = sand.u32 %s78, 1
          %s472 = scalar_lea.vmem [#allocation6], %s471
          %s474 = ssub.s32 16, 16
          %475 = vsyncadd %s470, %s474
          %s476 = smul.addr %s37, 16
          %s477 = scalar_lea.hbm %s1, %s476
          %s479 = sshll.u32 %s472, 4
          %s480 = int_to_ptr.vmem [resolvable:$true] %s479
          %482 = dma.hbm_to_vmem [thread:$0]  %s477, 16, %s480, %s470
        $region48: #{tpu_custom_call.1} parent=39 // pred_fallthru
          _
        // Predicated region
        $region49: #{tpu_custom_call.1} parent=39 // pred_check
          %p483 = pneg %p114
        $region50: #{tpu_custom_call.1} parent=39 // pred_check_branch
          %485 = sbr.rel (%p483) target = $region52
        $region51: #{tpu_custom_call.1} parent=39 // pred_region
          %p486 = scmp.lt.s32.totalorder %s37, 1
          %s487 = scalar_select %p486, %s37, 1
          %s488 = smul.addr %s487, 2
          %s489 = smul.addr %s488, 8
          %s490 = scalar_lea.vmem %s2, %s489
        $region52: #{tpu_custom_call.1} parent=39 // pred_fallthru
          _
        // Predicated region
        $region53: #{tpu_custom_call.1} parent=39 // pred_check
          %p491 = pneg %p224
        $region54: #{tpu_custom_call.1} parent=39 // pred_check_branch
          %493 = sbr.rel (%p491) target = $region56
        $region55: #{tpu_custom_call.1} parent=39 // pred_region
          %s494 = sand.u32 %s30, 1
          %s495 = scalar_lea.sflag [#allocation4], %s494
          %s496 = sand.u32 %s214, 1
          %s497 = smul.addr %s496, 512
          %s498 = scalar_lea.vmem [#allocation14], %s497
          %s500 = ssub.s32 8192, 8192
          %501 = vsyncadd %s495, %s500
          %s502 = smul.addr %s38, 64
          %s503 = smul.addr %s502, 128
          %s504 = scalar_lea.hbm %s7, %s503
          %s505 = sshll.u32 %s498, 4
          %s506 = int_to_ptr.vmem [resolvable:$true] %s505
          %511 = dma.hbm_to_vmem [thread:$0]  %s504, 8192, %s506, %s495, 512, 512, 32
        $region56: #{tpu_custom_call.1} parent=39 // pred_fallthru
          _
        // Predicated region
        $region57: #{tpu_custom_call.1} parent=39 // pred_check
          %p512 = pneg %p250
        $region58: #{tpu_custom_call.1} parent=39 // pred_check_branch
          %514 = sbr.rel (%p512) target = $region60
        $region59: #{tpu_custom_call.1} parent=39 // pred_region
          %s515 = sand.u32 %s30, 1
          %s516 = scalar_lea.sflag [#allocation7], %s515
          %s517 = sand.u32 %s240, 1
          %s518 = smul.addr %s517, 4
          %s519 = scalar_lea.vmem [#allocation15], %s518
          %s521 = ssub.s32 64, 64
          %522 = vsyncadd %s516, %s521
          %s523 = smul.addr %s38, 4
          %s524 = smul.addr %s523, 16
          %s525 = scalar_lea.hbm %s8, %s524
          %s527 = sshll.u32 %s519, 4
          %s528 = int_to_ptr.vmem [resolvable:$true] %s527
          %530 = dma.hbm_to_vmem [thread:$0]  %s525, 64, %s528, %s516
        $region60: #{tpu_custom_call.1} parent=39 // pred_fallthru
          _
      $region40: #{tpu_custom_call.1} parent=5 // pred_fallthru
        _
      %p531 = scmp.le.s32.totalorder 1, %s30
      %p532 = scmp.lt.s32.totalorder %s30, 11
      %p533 = pnand %p531, %p532
      %p534 = pneg %p533
      // Predicated region
      $region61: #{tpu_custom_call.1} parent=5 // pred_check
        _
      $region62: #{tpu_custom_call.1} parent=5 // pred_check_branch
        %536 = sbr.rel (%p533) target = $region64
      $region63: #{tpu_custom_call.1} parent=5 // pred_region
        %s537 = ssub.s32 %s30, 1
        %s538 = sand.u32 %s35, 1
        %s539 = scalar_lea.sflag [#allocation4], %s538
        %s540 = sand.u32 %s55, 1
        %s541 = smul.addr %s540, 16
        %s542 = scalar_lea.vmem [#allocation3], %s541
        // Predicated region
        $region65: #{tpu_custom_call.1} parent=63 // pred_check
          %p543 = pneg %p68
        $region66: #{tpu_custom_call.1} parent=63 // pred_check_branch
          %545 = sbr.rel (%p543) target = $region68
        $region67: #{tpu_custom_call.1} parent=63 // pred_region
          %546 = dma.done %s539, 256
        $region68: #{tpu_custom_call.1} parent=63 // pred_fallthru
          _
        %s547 = sand.u32 %s35, 1
        %s548 = scalar_lea.sflag [#allocation7], %s547
        %s549 = sand.u32 %s81, 1
        %s550 = scalar_lea.vmem [#allocation6], %s549
        // Predicated region
        $region69: #{tpu_custom_call.1} parent=63 // pred_check
          %p551 = pneg %p94
        $region70: #{tpu_custom_call.1} parent=63 // pred_check_branch
          %553 = sbr.rel (%p551) target = $region72
        $region71: #{tpu_custom_call.1} parent=63 // pred_region
          %554 = dma.done %s548, 16
        $region72: #{tpu_custom_call.1} parent=63 // pred_fallthru
          _
        // Predicated region
        $region73: #{tpu_custom_call.1} parent=63 // pred_check
          %p555 = pneg %p141
        $region74: #{tpu_custom_call.1} parent=63 // pred_check_branch
          %557 = sbr.rel (%p555) target = $region76
        $region75: #{tpu_custom_call.1} parent=63 // pred_region
          %558 = dma.done [#allocation7], 2048
        $region76: #{tpu_custom_call.1} parent=63 // pred_fallthru
          _
        // Predicated region
        $region77: #{tpu_custom_call.1} parent=63 // pred_check
          %p559 = pneg %p162
        $region78: #{tpu_custom_call.1} parent=63 // pred_check_branch
          %561 = sbr.rel (%p559) target = $region80
        $region79: #{tpu_custom_call.1} parent=63 // pred_region
          %562 = dma.done [#allocation10], 16
        $region80: #{tpu_custom_call.1} parent=63 // pred_fallthru
          _
        // Predicated region
        $region81: #{tpu_custom_call.1} parent=63 // pred_check
          %p563 = pneg %p183
        $region82: #{tpu_custom_call.1} parent=63 // pred_check_branch
          %565 = sbr.rel (%p563) target = $region84
        $region83: #{tpu_custom_call.1} parent=63 // pred_region
          %566 = dma.done [#allocation10], 2048
        $region84: #{tpu_custom_call.1} parent=63 // pred_fallthru
          _
        // Predicated region
        $region85: #{tpu_custom_call.1} parent=63 // pred_check
          %p567 = pneg %p204
        $region86: #{tpu_custom_call.1} parent=63 // pred_check_branch
          %569 = sbr.rel (%p567) target = $region88
        $region87: #{tpu_custom_call.1} parent=63 // pred_region
          %570 = dma.done [#allocation13], 16
        $region88: #{tpu_custom_call.1} parent=63 // pred_fallthru
          _
        %s571 = sand.u32 %s35, 1
        %s572 = scalar_lea.sflag [#allocation4], %s571
        %s573 = sand.u32 %s217, 1
        %s574 = smul.addr %s573, 512
        %s575 = scalar_lea.vmem [#allocation14], %s574
        // Predicated region
        $region89: #{tpu_custom_call.1} parent=63 // pred_check
          %p576 = pneg %p230
        $region90: #{tpu_custom_call.1} parent=63 // pred_check_branch
          %578 = sbr.rel (%p576) target = $region92
        $region91: #{tpu_custom_call.1} parent=63 // pred_region
          %579 = dma.done %s572, 8192
        $region92: #{tpu_custom_call.1} parent=63 // pred_fallthru
          _
        %s580 = sand.u32 %s35, 1
        %s581 = scalar_lea.sflag [#allocation7], %s580
        %s582 = sand.u32 %s243, 1
        %s583 = smul.addr %s582, 4
        %s584 = scalar_lea.vmem [#allocation15], %s583
        // Predicated region
        $region93: #{tpu_custom_call.1} parent=63 // pred_check
          %p585 = pneg %p256
        $region94: #{tpu_custom_call.1} parent=63 // pred_check_branch
          %587 = sbr.rel (%p585) target = $region96
        $region95: #{tpu_custom_call.1} parent=63 // pred_region
          %588 = dma.done %s581, 64
        $region96: #{tpu_custom_call.1} parent=63 // pred_fallthru
          _
        // Predicated region
        $region97: #{tpu_custom_call.1} parent=63 // pred_check
          %p589 = pneg %p277
        $region98: #{tpu_custom_call.1} parent=63 // pred_check_branch
          %591 = sbr.rel (%p589) target = $region100
        $region99: #{tpu_custom_call.1} parent=63 // pred_region
          %592 = dma.done [#allocation10], 256
        $region100: #{tpu_custom_call.1} parent=63 // pred_fallthru
          _
        // Predicated region
        $region101: #{tpu_custom_call.1} parent=63 // pred_check
          %p593 = pneg %p298
        $region102: #{tpu_custom_call.1} parent=63 // pred_check_branch
          %595 = sbr.rel (%p593) target = $region104
        $region103: #{tpu_custom_call.1} parent=63 // pred_region
          %596 = dma.done [#allocation13], 256
        $region104: #{tpu_custom_call.1} parent=63 // pred_fallthru
          _
        %s597 = sand.u32 %s35, 1
        %s598 = scalar_lea.sflag [#allocation4], %s597
        %s599 = sand.u32 %s55, 1
        %s600 = smul.addr %s599, 16
        %s601 = scalar_lea.vmem [#allocation3], %s600
        %p602 = pneg %p68
        %p603 = pneg %p65
        %s604 = sand.u32 %s35, 1
        %s605 = scalar_lea.sflag [#allocation7], %s604
        %s606 = sand.u32 %s81, 1
        %s607 = scalar_lea.vmem [#allocation6], %s606
        %p608 = pneg %p94
        %p609 = pneg %p91
        %p610 = scmp.lt.s32.totalorder %s39, 1
        %s611 = scalar_select %p610, %s39, 1
        %s612 = smul.addr %s611, 2
        %s613 = smul.addr %s612, 8
        %s614 = scalar_lea.vmem %s2, %s613
        %p615 = pneg %p120
        %p616 = pneg %p117
        %p617 = pneg %p141
        %p618 = pneg %p138
        %p619 = pneg %p162
        %p620 = pneg %p159
        %p621 = pneg %p183
        %p622 = pneg %p180
        %p623 = pneg %p204
        %p624 = pneg %p201
        %s625 = sand.u32 %s35, 1
        %s626 = scalar_lea.sflag [#allocation4], %s625
        %s627 = sand.u32 %s217, 1
        %s628 = smul.addr %s627, 512
        %s629 = scalar_lea.vmem [#allocation14], %s628
        %p630 = pneg %p230
        %p631 = pneg %p227
        %s632 = sand.u32 %s35, 1
        %s633 = scalar_lea.sflag [#allocation7], %s632
        %s634 = sand.u32 %s243, 1
        %s635 = smul.addr %s634, 4
        %s636 = scalar_lea.vmem [#allocation15], %s635
        %p637 = pneg %p256
        %p638 = pneg %p253
        %p639 = pneg %p277
        %p640 = pneg %p274
        %p641 = pneg %p298
        %p642 = pneg %p295
        %p643 = pneg %p324
        %p644 = pneg %p321
        %s645 = sand.u32 %s311, 1
        %s646 = scalar_lea.sflag [#allocation5], %s645
        %s647 = sand.u32 %s311, 1
        %s648 = smul.addr %s647, 16
        %s649 = scalar_lea.vmem [#allocation18], %s648
        %p650 = pneg %p352
        %p651 = pneg %p349
        %s652 = smul.u32 4, %s40
        %p653 = scmp.lt.s32.totalorder %s39, 1
        %s654 = scalar_select %p653, %s39, 1
        %p655 = scmp.lt.s32.totalorder %s652, 19
        %s656 = scalar_select %p655, %s652, 19
        %s657 = smul.addr %s656, 2
        %s658 = smul.addr %s654, 40
        %s659 = sadd.s32 %s657, %s658
        %s660 = smul.addr %s659, 8
        %s661 = scalar_lea.vmem %s12, %s660
        %p662 = scmp.lt.s32.totalorder %s39, 1
        %s663 = scalar_select %p662, %s39, 1
        %s664 = smul.addr %s663, 2
        %s665 = smul.addr %s664, 8
        %s666 = scalar_lea.vmem %s2, %s665
        %s667 = smul.u32 4, %s40
        %p668 = scmp.lt.s32.totalorder %s39, 1
        %s669 = scalar_select %p668, %s39, 1
        %p670 = scmp.lt.s32.totalorder %s667, 19
        %s671 = scalar_select %p670, %s667, 19
        %s672 = smul.addr %s671, 2
        %s673 = smul.addr %s669, 40
        %s674 = sadd.s32 %s672, %s673
        %s675 = smul.addr %s674, 8
        %s676 = scalar_lea.vmem %s12, %s675
        %s677 = smul.u32 4, %s40
        %p678 = scmp.eq.s32.totalorder %s40, 0
        // Predicated region
        $region105: #{tpu_custom_call.1} parent=63 // pred_check
          %p679 = pneg %p678
        $region106: #{tpu_custom_call.1} parent=63 // pred_check_branch
          %681 = sbr.rel (%p679) target = $region108
        $region107: #{tpu_custom_call.1} parent=63 // pred_region
          %v682 = vld [vmem:[%s542] sm:$0xff]
          %v683 = vld [vmem:[%s542 + $0x8] sm:$0xff]
          %v684 = vld [vmem:[#allocation8] sm:$0xff]
          %v685 = vld [vmem:[#allocation8 + $0x8] sm:$0xff]
          %v686 = vld [vmem:[#allocation8 + $0x10] sm:$0xff]
          %v687 = vld [vmem:[#allocation8 + $0x18] sm:$0xff]
          %v688 = vld [vmem:[#allocation8 + $0x20] sm:$0xff]
          %v689 = vld [vmem:[#allocation8 + $0x28] sm:$0xff]
          %v690 = vld [vmem:[#allocation8 + $0x30] sm:$0xff]
          %v691 = vld [vmem:[#allocation8 + $0x38] sm:$0xff]
          %v692 = vld [vmem:[#allocation8 + $0x40] sm:$0xff]
          %v693 = vld [vmem:[#allocation8 + $0x48] sm:$0xff]
          %v694 = vld [vmem:[#allocation8 + $0x50] sm:$0xff]
          %v695 = vld [vmem:[#allocation8 + $0x58] sm:$0xff]
          %v696 = vld [vmem:[#allocation8 + $0x60] sm:$0xff]
          %v697 = vld [vmem:[#allocation8 + $0x68] sm:$0xff]
          %v698 = vld [vmem:[#allocation8 + $0x70] sm:$0xff]
          %v699 = vld [vmem:[#allocation8 + $0x78] sm:$0xff]
          %v700 = vld [vmem:[#allocation9] sm:$0x1]
          %v702 = vlaneseq
          %v703 = vshrl.u32 %v702, 7
          %v704 = vsub.s32 0, %v703
          %v705 = vrot.slane %v700, %v704
          %707 = vmatprep.subr.mxu0 0.0
          %708 = vmatpush1.msra.mxu0 %v684
          %709 = vmatprep.subr.mxu0 0.0
          %710 = vmatpush1.msra.mxu0 %v685
          %711 = vmatprep.subr.mxu0 0.0
          %712 = vmatpush1.msra.mxu0 %v686
          %713 = vmatprep.subr.mxu0 0.0
          %714 = vmatpush1.msra.mxu0 %v687
          %715 = vmatprep.subr.mxu0 0.0
          %716 = vmatpush1.msra.mxu0 %v688
          %717 = vmatprep.subr.mxu0 0.0
          %718 = vmatpush1.msra.mxu0 %v689
          %719 = vmatprep.subr.mxu0 0.0
          %720 = vmatpush1.msra.mxu0 %v690
          %721 = vmatprep.subr.mxu0 0.0
          %722 = vmatpush1.msra.mxu0 %v691
          %723 = vmatprep.subr.mxu0 0.0
          %724 = vmatpush1.msra.mxu0 %v692
          %725 = vmatprep.subr.mxu0 0.0
          %726 = vmatpush1.msra.mxu0 %v693
          %727 = vmatprep.subr.mxu0 0.0
          %728 = vmatpush1.msra.mxu0 %v694
          %729 = vmatprep.subr.mxu0 0.0
          %730 = vmatpush1.msra.mxu0 %v695
          %731 = vmatprep.subr.mxu0 0.0
          %732 = vmatpush1.msra.mxu0 %v696
          %733 = vmatprep.subr.mxu0 0.0
          %734 = vmatpush1.msra.mxu0 %v697
          %735 = vmatprep.subr.mxu0 0.0
          %736 = vmatpush1.msra.mxu0 %v698
          %737 = vmatprep.subr.mxu0 0.0
          %738 = vmatpush1.msra.mxu0 %v699
          %739 = vmatprep.subr.mxu0 0.0
          %740 = vmatpush1.msra.mxu0 0.0
          %741 = vmatprep.subr.mxu0 0.0
          %742 = vmatpush1.msra.mxu0 0.0
          %743 = vmatprep.subr.mxu0 0.0
          %744 = vmatpush1.msra.mxu0 0.0
          %745 = vmatprep.subr.mxu0 0.0
          %746 = vmatpush1.msra.mxu0 0.0
          %747 = vmatprep.subr.mxu0 0.0
          %748 = vmatpush1.msra.mxu0 0.0
          %749 = vmatprep.subr.mxu0 0.0
          %750 = vmatpush1.msra.mxu0 0.0
          %751 = vmatprep.subr.mxu0 0.0
          %752 = vmatpush1.msra.mxu0 0.0
          %753 = vmatprep.subr.mxu0 0.0
          %754 = vmatpush1.msra.mxu0 0.0
          %755 = vmatprep.subr.mxu0 0.0
          %756 = vmatpush1.msra.mxu0 0.0
          %757 = vmatprep.subr.mxu0 0.0
          %758 = vmatpush1.msra.mxu0 0.0
          %759 = vmatprep.subr.mxu0 0.0
          %760 = vmatpush1.msra.mxu0 0.0
          %761 = vmatprep.subr.mxu0 0.0
          %762 = vmatpush1.msra.mxu0 0.0
          %763 = vmatprep.subr.mxu0 0.0
          %764 = vmatpush1.msra.mxu0 0.0
          %765 = vmatprep.subr.mxu0 0.0
          %766 = vmatpush1.msra.mxu0 0.0
          %767 = vmatprep.subr.mxu0 0.0
          %768 = vmatpush1.msra.mxu0 0.0
          %769 = vmatprep.subr.mxu0 0.0
          %770 = vmatpush1.msra.mxu0 0.0
          %771 = vmatprep.mubr.f32.mxu0 0.0
          %772 = vmatmul.mubr.f32.gmra.mrb[0].mxu0 %v682
          %v773 = vpop.f32.mrb[0].mxu0
          %v774 = vadd.f32 %v705, %v773
          %v775 = vpop.f32.mrb[0].mxu0
          %776 = vmatprep.mubr.f32.mxu0 0.0
          %777 = vmatmul.mubr.f32.gmra.mrb[0].mxu0 %v683
          %v778 = vpop.f32.mrb[0].mxu0
          %v779 = vadd.f32 %v705, %v778
          %v780 = vpop.f32.mrb[0].mxu0
          %781 = vdwg.mxu0
          %v782 = vmax.f32 %v774, 0.0
          %v783 = vmax.f32 %v779, 0.0
          %784 = vst [vmem:[#allocation2] sm:$0xff] %v782
          %785 = vst [vmem:[#allocation2 + $0x8] sm:$0xff] %v783
          %v786 = vld [vmem:[#allocation11] sm:$0xff]
          %v787 = vld [vmem:[#allocation11 + $0x8] sm:$0xff]
          %v788 = vld [vmem:[#allocation11 + $0x10] sm:$0xff]
          %v789 = vld [vmem:[#allocation11 + $0x18] sm:$0xff]
          %v790 = vld [vmem:[#allocation11 + $0x20] sm:$0xff]
          %v791 = vld [vmem:[#allocation11 + $0x28] sm:$0xff]
          %v792 = vld [vmem:[#allocation11 + $0x30] sm:$0xff]
          %v793 = vld [vmem:[#allocation11 + $0x38] sm:$0xff]
          %v794 = vld [vmem:[#allocation11 + $0x40] sm:$0xff]
          %v795 = vld [vmem:[#allocation11 + $0x48] sm:$0xff]
          %v796 = vld [vmem:[#allocation11 + $0x50] sm:$0xff]
          %v797 = vld [vmem:[#allocation11 + $0x58] sm:$0xff]
          %v798 = vld [vmem:[#allocation11 + $0x60] sm:$0xff]
          %v799 = vld [vmem:[#allocation11 + $0x68] sm:$0xff]
          %v800 = vld [vmem:[#allocation11 + $0x70] sm:$0xff]
          %v801 = vld [vmem:[#allocation11 + $0x78] sm:$0xff]
          %v802 = vld [vmem:[#allocation12] sm:$0x1]
          %v804 = vlaneseq
          %v805 = vshrl.u32 %v804, 7
          %v806 = vsub.s32 0, %v805
          %v807 = vrot.slane %v802, %v806
          %809 = vmatprep.subr.mxu0 0.0
          %810 = vmatpush1.msra.mxu0 %v786
          %811 = vmatprep.subr.mxu0 0.0
          %812 = vmatpush1.msra.mxu0 %v787
          %813 = vmatprep.subr.mxu0 0.0
          %814 = vmatpush1.msra.mxu0 %v788
          %815 = vmatprep.subr.mxu0 0.0
          %816 = vmatpush1.msra.mxu0 %v789
          %817 = vmatprep.subr.mxu0 0.0
          %818 = vmatpush1.msra.mxu0 %v790
          %819 = vmatprep.subr.mxu0 0.0
          %820 = vmatpush1.msra.mxu0 %v791
          %821 = vmatprep.subr.mxu0 0.0
          %822 = vmatpush1.msra.mxu0 %v792
          %823 = vmatprep.subr.mxu0 0.0
          %824 = vmatpush1.msra.mxu0 %v793
          %825 = vmatprep.subr.mxu0 0.0
          %826 = vmatpush1.msra.mxu0 %v794
          %827 = vmatprep.subr.mxu0 0.0
          %828 = vmatpush1.msra.mxu0 %v795
          %829 = vmatprep.subr.mxu0 0.0
          %830 = vmatpush1.msra.mxu0 %v796
          %831 = vmatprep.subr.mxu0 0.0
          %832 = vmatpush1.msra.mxu0 %v797
          %833 = vmatprep.subr.mxu0 0.0
          %834 = vmatpush1.msra.mxu0 %v798
          %835 = vmatprep.subr.mxu0 0.0
          %836 = vmatpush1.msra.mxu0 %v799
          %837 = vmatprep.subr.mxu0 0.0
          %838 = vmatpush1.msra.mxu0 %v800
          %839 = vmatprep.subr.mxu0 0.0
          %840 = vmatpush1.msra.mxu0 %v801
          %841 = vmatprep.subr.mxu0 0.0
          %842 = vmatpush1.msra.mxu0 0.0
          %843 = vmatprep.subr.mxu0 0.0
          %844 = vmatpush1.msra.mxu0 0.0
          %845 = vmatprep.subr.mxu0 0.0
          %846 = vmatpush1.msra.mxu0 0.0
          %847 = vmatprep.subr.mxu0 0.0
          %848 = vmatpush1.msra.mxu0 0.0
          %849 = vmatprep.subr.mxu0 0.0
          %850 = vmatpush1.msra.mxu0 0.0
          %851 = vmatprep.subr.mxu0 0.0
          %852 = vmatpush1.msra.mxu0 0.0
          %853 = vmatprep.subr.mxu0 0.0
          %854 = vmatpush1.msra.mxu0 0.0
          %855 = vmatprep.subr.mxu0 0.0
          %856 = vmatpush1.msra.mxu0 0.0
          %857 = vmatprep.subr.mxu0 0.0
          %858 = vmatpush1.msra.mxu0 0.0
          %859 = vmatprep.subr.mxu0 0.0
          %860 = vmatpush1.msra.mxu0 0.0
          %861 = vmatprep.subr.mxu0 0.0
          %862 = vmatpush1.msra.mxu0 0.0
          %863 = vmatprep.subr.mxu0 0.0
          %864 = vmatpush1.msra.mxu0 0.0
          %865 = vmatprep.subr.mxu0 0.0
          %866 = vmatpush1.msra.mxu0 0.0
          %867 = vmatprep.subr.mxu0 0.0
          %868 = vmatpush1.msra.mxu0 0.0
          %869 = vmatprep.subr.mxu0 0.0
          %870 = vmatpush1.msra.mxu0 0.0
          %871 = vmatprep.subr.mxu0 0.0
          %872 = vmatpush1.msra.mxu0 0.0
          %873 = vmatprep.mubr.f32.mxu0 0.0
          %874 = vmatmul.mubr.f32.gmra.mrb[0].mxu0 %v782
          %v875 = vpop.f32.mrb[0].mxu0
          %v876 = vadd.f32 %v807, %v875
          %v877 = vpop.f32.mrb[0].mxu0
          %878 = vmatprep.mubr.f32.mxu0 0.0
          %879 = vmatmul.mubr.f32.gmra.mrb[0].mxu0 %v783
          %v880 = vpop.f32.mrb[0].mxu0
          %v881 = vadd.f32 %v807, %v880
          %v882 = vpop.f32.mrb[0].mxu0
          %883 = vdwg.mxu0
          %884 = vst [vmem:[%s649] sm:$0xff] %v876
          %885 = vst [vmem:[%s649 + $0x8] sm:$0xff] %v881
        $region108: #{tpu_custom_call.1} parent=63 // pred_fallthru
          _
        %v886 = vld [vmem:[#allocation2] sm:$0xff]
        %v887 = vld [vmem:[#allocation2 + $0x8] sm:$0xff]
        %v888 = vld [vmem:[%s575] sm:$0xff]
        %v889 = vld [vmem:[%s575 + $0x8] sm:$0xff]
        %v890 = vld [vmem:[%s575 + $0x10] sm:$0xff]
        %v891 = vld [vmem:[%s575 + $0x18] sm:$0xff]
        %v892 = vld [vmem:[%s575 + $0x20] sm:$0xff]
        %v893 = vld [vmem:[%s575 + $0x28] sm:$0xff]
        %v894 = vld [vmem:[%s575 + $0x30] sm:$0xff]
        %v895 = vld [vmem:[%s575 + $0x38] sm:$0xff]
        %v896 = vld [vmem:[%s575 + $0x40] sm:$0xff]
        %v897 = vld [vmem:[%s575 + $0x48] sm:$0xff]
        %v898 = vld [vmem:[%s575 + $0x50] sm:$0xff]
        %v899 = vld [vmem:[%s575 + $0x58] sm:$0xff]
        %v900 = vld [vmem:[%s575 + $0x60] sm:$0xff]
        %v901 = vld [vmem:[%s575 + $0x68] sm:$0xff]
        %v902 = vld [vmem:[%s575 + $0x70] sm:$0xff]
        %v903 = vld [vmem:[%s575 + $0x78] sm:$0xff]
        %v904 = vld [vmem:[%s575 + $0x80] sm:$0xff]
        %v905 = vld [vmem:[%s575 + $0x88] sm:$0xff]
        %v906 = vld [vmem:[%s575 + $0x90] sm:$0xff]
        %v907 = vld [vmem:[%s575 + $0x98] sm:$0xff]
        %v908 = vld [vmem:[%s575 + $0xa0] sm:$0xff]
        %v909 = vld [vmem:[%s575 + $0xa8] sm:$0xff]
        %v910 = vld [vmem:[%s575 + $0xb0] sm:$0xff]
        %v911 = vld [vmem:[%s575 + $0xb8] sm:$0xff]
        %v912 = vld [vmem:[%s575 + $0xc0] sm:$0xff]
        %v913 = vld [vmem:[%s575 + $0xc8] sm:$0xff]
        %v914 = vld [vmem:[%s575 + $0xd0] sm:$0xff]
        %v915 = vld [vmem:[%s575 + $0xd8] sm:$0xff]
        %v916 = vld [vmem:[%s575 + $0xe0] sm:$0xff]
        %v917 = vld [vmem:[%s575 + $0xe8] sm:$0xff]
        %v918 = vld [vmem:[%s575 + $0xf0] sm:$0xff]
        %v919 = vld [vmem:[%s575 + $0xf8] sm:$0xff]
        %v920 = vld [vmem:[%s575 + $0x100] sm:$0xff]
        %v921 = vld [vmem:[%s575 + $0x108] sm:$0xff]
        %v922 = vld [vmem:[%s575 + $0x110] sm:$0xff]
        %v923 = vld [vmem:[%s575 + $0x118] sm:$0xff]
        %v924 = vld [vmem:[%s575 + $0x120] sm:$0xff]
        %v925 = vld [vmem:[%s575 + $0x128] sm:$0xff]
        %v926 = vld [vmem:[%s575 + $0x130] sm:$0xff]
        %v927 = vld [vmem:[%s575 + $0x138] sm:$0xff]
        %v928 = vld [vmem:[%s575 + $0x140] sm:$0xff]
        %v929 = vld [vmem:[%s575 + $0x148] sm:$0xff]
        %v930 = vld [vmem:[%s575 + $0x150] sm:$0xff]
        %v931 = vld [vmem:[%s575 + $0x158] sm:$0xff]
        %v932 = vld [vmem:[%s575 + $0x160] sm:$0xff]
        %v933 = vld [vmem:[%s575 + $0x168] sm:$0xff]
        %v934 = vld [vmem:[%s575 + $0x170] sm:$0xff]
        %v935 = vld [vmem:[%s575 + $0x178] sm:$0xff]
        %v936 = vld [vmem:[%s575 + $0x180] sm:$0xff]
        %v937 = vld [vmem:[%s575 + $0x188] sm:$0xff]
        %v938 = vld [vmem:[%s575 + $0x190] sm:$0xff]
        %v939 = vld [vmem:[%s575 + $0x198] sm:$0xff]
        %v940 = vld [vmem:[%s575 + $0x1a0] sm:$0xff]
        %v941 = vld [vmem:[%s575 + $0x1a8] sm:$0xff]
        %v942 = vld [vmem:[%s575 + $0x1b0] sm:$0xff]
        %v943 = vld [vmem:[%s575 + $0x1b8] sm:$0xff]
        %v944 = vld [vmem:[%s575 + $0x1c0] sm:$0xff]
        %v945 = vld [vmem:[%s575 + $0x1c8] sm:$0xff]
        %v946 = vld [vmem:[%s575 + $0x1d0] sm:$0xff]
        %v947 = vld [vmem:[%s575 + $0x1d8] sm:$0xff]
        %v948 = vld [vmem:[%s575 + $0x1e0] sm:$0xff]
        %v949 = vld [vmem:[%s575 + $0x1e8] sm:$0xff]
        %v950 = vld [vmem:[%s575 + $0x1f0] sm:$0xff]
        %v951 = vld [vmem:[%s575 + $0x1f8] sm:$0xff]
        %v952 = vld [vmem:[%s584] sm:$0xf]
        %v954 = vlaneseq
        %v955 = vshrl.u32 %v954, 7
        %v956 = vsub.s32 0, %v955
        %v957 = vrot.slane %v952, %v956
        %v958 = vlaneseq
        %v959 = vshrl.u32 %v958, 7
        %v960 = vsub.s32 1, %v959
        %v961 = vrot.slane %v952, %v960
        %v962 = vlaneseq
        %v963 = vshrl.u32 %v962, 7
        %v964 = vsub.s32 2, %v963
        %v965 = vrot.slane %v952, %v964
        %v966 = vlaneseq
        %v967 = vshrl.u32 %v966, 7
        %v968 = vsub.s32 3, %v967
        %v969 = vrot.slane %v952, %v968
        %974 = vmatprep.subr.mxu0 %v889
        %975 = vmatpush1.msra.mxu0 %v888
        %976 = vmatprep.subr.mxu0 %v893
        %977 = vmatpush1.msra.mxu0 %v892
        %978 = vmatprep.subr.mxu0 %v897
        %979 = vmatpush1.msra.mxu0 %v896
        %980 = vmatprep.subr.mxu0 %v901
        %981 = vmatpush1.msra.mxu0 %v900
        %982 = vmatprep.subr.mxu0 %v905
        %983 = vmatpush1.msra.mxu0 %v904
        %984 = vmatprep.subr.mxu0 %v909
        %985 = vmatpush1.msra.mxu0 %v908
        %986 = vmatprep.subr.mxu0 %v913
        %987 = vmatpush1.msra.mxu0 %v912
        %988 = vmatprep.subr.mxu0 %v917
        %989 = vmatpush1.msra.mxu0 %v916
        %990 = vmatprep.subr.mxu0 %v921
        %991 = vmatpush1.msra.mxu0 %v920
        %992 = vmatprep.subr.mxu0 %v925
        %993 = vmatpush1.msra.mxu0 %v924
        %994 = vmatprep.subr.mxu0 %v929
        %995 = vmatpush1.msra.mxu0 %v928
        %996 = vmatprep.subr.mxu0 %v933
        %997 = vmatpush1.msra.mxu0 %v932
        %998 = vmatprep.subr.mxu0 %v937
        %999 = vmatpush1.msra.mxu0 %v936
        %1000 = vmatprep.subr.mxu0 %v941
        %1001 = vmatpush1.msra.mxu0 %v940
        %1002 = vmatprep.subr.mxu0 %v945
        %1003 = vmatpush1.msra.mxu0 %v944
        %1004 = vmatprep.subr.mxu0 %v949
        %1005 = vmatpush1.msra.mxu0 %v948
        %1006 = vmatprep.subr.mxu0 0.0
        %1007 = vmatpush1.msra.mxu0 0.0
        %1008 = vmatprep.subr.mxu0 0.0
        %1009 = vmatpush1.msra.mxu0 0.0
        %1010 = vmatprep.subr.mxu0 0.0
        %1011 = vmatpush1.msra.mxu0 0.0
        %1012 = vmatprep.subr.mxu0 0.0
        %1013 = vmatpush1.msra.mxu0 0.0
        %1014 = vmatprep.subr.mxu0 0.0
        %1015 = vmatpush1.msra.mxu0 0.0
        %1016 = vmatprep.subr.mxu0 0.0
        %1017 = vmatpush1.msra.mxu0 0.0
        %1018 = vmatprep.subr.mxu0 0.0
        %1019 = vmatpush1.msra.mxu0 0.0
        %1020 = vmatprep.subr.mxu0 0.0
        %1021 = vmatpush1.msra.mxu0 0.0
        %1022 = vmatprep.subr.mxu0 0.0
        %1023 = vmatpush1.msra.mxu0 0.0
        %1024 = vmatprep.subr.mxu0 0.0
        %1025 = vmatpush1.msra.mxu0 0.0
        %1026 = vmatprep.subr.mxu0 0.0
        %1027 = vmatpush1.msra.mxu0 0.0
        %1028 = vmatprep.subr.mxu0 0.0
        %1029 = vmatpush1.msra.mxu0 0.0
        %1030 = vmatprep.subr.mxu0 0.0
        %1031 = vmatpush1.msra.mxu0 0.0
        %1032 = vmatprep.subr.mxu0 0.0
        %1033 = vmatpush1.msra.mxu0 0.0
        %1034 = vmatprep.subr.mxu0 0.0
        %1035 = vmatpush1.msra.mxu0 0.0
        %1036 = vmatprep.subr.mxu0 0.0
        %1037 = vmatpush1.msra.mxu0 0.0
        %1038 = vmatprep.mubr.f32.mxu0 0.0
        %1039 = vmatmul.mubr.f32.gmra.mrb[0].mxu0 %v886
        %v1040 = vpop.f32.mrb[0].mxu0
        %v1041 = vadd.f32 %v957, %v1040
        %v1042 = vpop.f32.mrb[0].mxu0
        %v1043 = vadd.f32 %v961, %v1042
        %1044 = vmatprep.mubr.f32.mxu0 0.0
        %1045 = vmatmul.mubr.f32.gmra.mrb[0].mxu0 %v887
        %v1046 = vpop.f32.mrb[0].mxu0
        %v1047 = vadd.f32 %v957, %v1046
        %v1048 = vpop.f32.mrb[0].mxu0
        %v1049 = vadd.f32 %v961, %v1048
        %1050 = vdwg.mxu0
        %1051 = vmatprep.subr.mxu0 %v891
        %1052 = vmatpush1.msra.mxu0 %v890
        %1053 = vmatprep.subr.mxu0 %v895
        %1054 = vmatpush1.msra.mxu0 %v894
        %1055 = vmatprep.subr.mxu0 %v899
        %1056 = vmatpush1.msra.mxu0 %v898
        %1057 = vmatprep.subr.mxu0 %v903
        %1058 = vmatpush1.msra.mxu0 %v902
        %1059 = vmatprep.subr.mxu0 %v907
        %1060 = vmatpush1.msra.mxu0 %v906
        %1061 = vmatprep.subr.mxu0 %v911
        %1062 = vmatpush1.msra.mxu0 %v910
        %1063 = vmatprep.subr.mxu0 %v915
        %1064 = vmatpush1.msra.mxu0 %v914
        %1065 = vmatprep.subr.mxu0 %v919
        %1066 = vmatpush1.msra.mxu0 %v918
        %1067 = vmatprep.subr.mxu0 %v923
        %1068 = vmatpush1.msra.mxu0 %v922
        %1069 = vmatprep.subr.mxu0 %v927
        %1070 = vmatpush1.msra.mxu0 %v926
        %1071 = vmatprep.subr.mxu0 %v931
        %1072 = vmatpush1.msra.mxu0 %v930
        %1073 = vmatprep.subr.mxu0 %v935
        %1074 = vmatpush1.msra.mxu0 %v934
        %1075 = vmatprep.subr.mxu0 %v939
        %1076 = vmatpush1.msra.mxu0 %v938
        %1077 = vmatprep.subr.mxu0 %v943
        %1078 = vmatpush1.msra.mxu0 %v942
        %1079 = vmatprep.subr.mxu0 %v947
        %1080 = vmatpush1.msra.mxu0 %v946
        %1081 = vmatprep.subr.mxu0 %v951
        %1082 = vmatpush1.msra.mxu0 %v950
        %1083 = vmatprep.subr.mxu0 0.0
        %1084 = vmatpush1.msra.mxu0 0.0
        %1085 = vmatprep.subr.mxu0 0.0
        %1086 = vmatpush1.msra.mxu0 0.0
        %1087 = vmatprep.subr.mxu0 0.0
        %1088 = vmatpush1.msra.mxu0 0.0
        %1089 = vmatprep.subr.mxu0 0.0
        %1090 = vmatpush1.msra.mxu0 0.0
        %1091 = vmatprep.subr.mxu0 0.0
        %1092 = vmatpush1.msra.mxu0 0.0
        %1093 = vmatprep.subr.mxu0 0.0
        %1094 = vmatpush1.msra.mxu0 0.0
        %1095 = vmatprep.subr.mxu0 0.0
        %1096 = vmatpush1.msra.mxu0 0.0
        %1097 = vmatprep.subr.mxu0 0.0
        %1098 = vmatpush1.msra.mxu0 0.0
        %1099 = vmatprep.subr.mxu0 0.0
        %1100 = vmatpush1.msra.mxu0 0.0
        %1101 = vmatprep.subr.mxu0 0.0
        %1102 = vmatpush1.msra.mxu0 0.0
        %1103 = vmatprep.subr.mxu0 0.0
        %1104 = vmatpush1.msra.mxu0 0.0
        %1105 = vmatprep.subr.mxu0 0.0
        %1106 = vmatpush1.msra.mxu0 0.0
        %1107 = vmatprep.subr.mxu0 0.0
        %1108 = vmatpush1.msra.mxu0 0.0
        %1109 = vmatprep.subr.mxu0 0.0
        %1110 = vmatpush1.msra.mxu0 0.0
        %1111 = vmatprep.subr.mxu0 0.0
        %1112 = vmatpush1.msra.mxu0 0.0
        %1113 = vmatprep.subr.mxu0 0.0
        %1114 = vmatpush1.msra.mxu0 0.0
        %1115 = vmatprep.mubr.f32.mxu0 0.0
        %1116 = vmatmul.mubr.f32.gmra.mrb[0].mxu0 %v886
        %v1117 = vpop.f32.mrb[0].mxu0
        %v1118 = vadd.f32 %v965, %v1117
        %v1119 = vpop.f32.mrb[0].mxu0
        %v1120 = vadd.f32 %v969, %v1119
        %1121 = vmatprep.mubr.f32.mxu0 0.0
        %1122 = vmatmul.mubr.f32.gmra.mrb[0].mxu0 %v887
        %v1123 = vpop.f32.mrb[0].mxu0
        %v1124 = vadd.f32 %v965, %v1123
        %v1125 = vpop.f32.mrb[0].mxu0
        %v1126 = vadd.f32 %v969, %v1125
        %1127 = vdwg.mxu0
        %v1128 = vld [vmem:[#allocation16] sm:$0xff]
        %v1129 = vld [vmem:[#allocation16 + $0x8] sm:$0xff]
        %v1130 = vld [vmem:[#allocation17] sm:$0xff]
        %v1131 = vld [vmem:[#allocation17 + $0x8] sm:$0xff]
        %v1132 = vmul.f32 %v1041, %v1128
        %v1133 = vmul.f32 %v1047, %v1129
        %v1134 = vmul.f32 %v1043, %v1130
        %v1135 = vmul.f32 %v1049, %v1131
        %v1136 = vadd.f32 %v1132, %v1134
        %v1137 = vadd.f32 %v1133, %v1135
        %v1138 = vmul.f32 %v1118, %v1128
        %v1139 = vmul.f32 %v1124, %v1129
        %v1140 = vmul.f32 %v1120, %v1130
        %v1141 = vmul.f32 %v1126, %v1131
        %v1142 = vadd.f32 %v1138, %v1140
        %v1143 = vadd.f32 %v1139, %v1141
        %v1144 = vld [vmem:[%s666] sm:$0xff]
        %v1145 = vld [vmem:[%s666 + $0x8] sm:$0xff]
        %v1146 = vld [vmem:[%s550] sm:$0x1]
        %1148 = vset.pattern.permute.xlu0 0
        %1149 = vperm.xlu0 %1148, %v1144
        %v1150 = vpop.permute.xlu0 %1149
        %1153 = vset.pattern.permute.xlu0 0
        %1154 = vperm.xlu0 %1153, %v1145
        %v1155 = vpop.permute.xlu0 %1154
        %v1158 = vlaneseq
        %v1159 = vshrl.u32 %v1158, 7
        %v1160 = vsub.s32 0, %v1159
        %v1161 = vrot.slane %v1146, %v1160
        %v1163 = vmul.f32 %v1150, %v1161
        %v1164 = vmul.f32 %v1155, %v1161
        %v1165 = vlaneseq
        %v1166 = vshrl.u32 %v1165, 7
        %v1167 = vadd.s32 %v1166, 8
        %v1168 = vlaneseq
        %v1169 = vand.u32 %v1168, 127
        %vm1170 = vcmp.gt.f32.partialorder %v1163, 0.0
        %vm1171 = vcmp.gt.f32.partialorder %v1164, 0.0
        %vm1172 = vcmp.le.s32.totalorder %v1166, %v1169
        %vm1173 = vcmp.le.s32.totalorder %v1167, %v1169
        %vm1174 = vmand %vm1170, %vm1172
        %vm1175 = vmand %vm1171, %vm1173
        %vm1176 = vcmask 261120
        %v1178 = vsel %vm1176, %v1136, 0
        %v1181 = vsel %vm1176, %v1137, 0
        %v1184 = vsel %vm1176, %v1142, 0
        %v1187 = vsel %vm1176, %v1143, 0
        %1189 = vmatprep.subr.mxu0 0.0
        %1190 = vmatpush1.xpose.msra.mxu0 %v1184
        %1191 = vmatprep.subr.mxu0 0.0
        %1192 = vmatpush1.xpose.msra.mxu0 %v1187
        %1193 = vmatprep.subr.mxu0 0.0
        %1194 = vmatpush1.xpose.msra.mxu0 0.0
        %1195 = vmatprep.subr.mxu0 0.0
        %1196 = vmatpush1.xpose.msra.mxu0 0.0
        %1197 = vmatprep.subr.mxu0 0.0
        %1198 = vmatpush1.xpose.msra.mxu0 0.0
        %1199 = vmatprep.subr.mxu0 0.0
        %1200 = vmatpush1.xpose.msra.mxu0 0.0
        %1201 = vmatprep.subr.mxu0 0.0
        %1202 = vmatpush1.xpose.msra.mxu0 0.0
        %1203 = vmatprep.subr.mxu0 0.0
        %1204 = vmatpush1.xpose.msra.mxu0 0.0
        %1205 = vmatprep.subr.mxu0 0.0
        %1206 = vmatpush1.xpose.msra.mxu0 0.0
        %1207 = vmatprep.subr.mxu0 0.0
        %1208 = vmatpush1.xpose.msra.mxu0 0.0
        %1209 = vmatprep.subr.mxu0 0.0
        %1210 = vmatpush1.xpose.msra.mxu0 0.0
        %1211 = vmatprep.subr.mxu0 0.0
        %1212 = vmatpush1.xpose.msra.mxu0 0.0
        %1213 = vmatprep.subr.mxu0 0.0
        %1214 = vmatpush1.xpose.msra.mxu0 0.0
        %1215 = vmatprep.subr.mxu0 0.0
        %1216 = vmatpush1.xpose.msra.mxu0 0.0
        %1217 = vmatprep.subr.mxu0 0.0
        %1218 = vmatpush1.xpose.msra.mxu0 0.0
        %1219 = vmatprep.subr.mxu0 0.0
        %1220 = vmatpush1.xpose.msra.mxu0 0.0
        %1221 = vmatprep.subr.mxu0 0.0
        %1222 = vmatpush1.xpose.msra.mxu0 0.0
        %1223 = vmatprep.subr.mxu0 0.0
        %1224 = vmatpush1.xpose.msra.mxu0 0.0
        %1225 = vmatprep.subr.mxu0 0.0
        %1226 = vmatpush1.xpose.msra.mxu0 0.0
        %1227 = vmatprep.subr.mxu0 0.0
        %1228 = vmatpush1.xpose.msra.mxu0 0.0
        %1229 = vmatprep.subr.mxu0 0.0
        %1230 = vmatpush1.xpose.msra.mxu0 0.0
        %1231 = vmatprep.subr.mxu0 0.0
        %1232 = vmatpush1.xpose.msra.mxu0 0.0
        %1233 = vmatprep.subr.mxu0 0.0
        %1234 = vmatpush1.xpose.msra.mxu0 0.0
        %1235 = vmatprep.subr.mxu0 0.0
        %1236 = vmatpush1.xpose.msra.mxu0 0.0
        %1237 = vmatprep.subr.mxu0 0.0
        %1238 = vmatpush1.xpose.msra.mxu0 0.0
        %1239 = vmatprep.subr.mxu0 0.0
        %1240 = vmatpush1.xpose.msra.mxu0 0.0
        %1241 = vmatprep.subr.mxu0 0.0
        %1242 = vmatpush1.xpose.msra.mxu0 0.0
        %1243 = vmatprep.subr.mxu0 0.0
        %1244 = vmatpush1.xpose.msra.mxu0 0.0
        %1245 = vmatprep.subr.mxu0 0.0
        %1246 = vmatpush1.xpose.msra.mxu0 0.0
        %1247 = vmatprep.subr.mxu0 0.0
        %1248 = vmatpush1.xpose.msra.mxu0 0.0
        %1249 = vmatprep.subr.mxu0 0.0
        %1250 = vmatpush1.xpose.msra.mxu0 0.0
        %1251 = vmatprep.subr.mxu0 0.0
        %1252 = vmatpush1.xpose.msra.mxu0 0.0
        %1253 = vmatprep.mubr.f32.mxu0 0.0
        %1254 = vmatmul.mubr.f32.gmra.mrb[0].mxu0 %v1178
        %v1255 = vpop.f32.mrb[0].mxu0
        %v1256 = vadd.f32 0.0, %v1255
        %v1257 = vpop.f32.mrb[0].mxu0
        %1258 = vmatprep.mubr.f32.mxu0 0.0
        %1259 = vmatmul.mubr.f32.gmra.mrb[0].mxu0 %v1181
        %v1260 = vpop.f32.mrb[0].mxu0
        %v1261 = vadd.f32 0.0, %v1260
        %v1262 = vpop.f32.mrb[0].mxu0
        %1263 = vdwg.mxu0
        %v1264 = vsel %vm1174, %v1256, -1e+12
        %v1265 = vsel %vm1175, %v1261, -1e+12
        %vm1266 = vcmask 130048
        %1267 = vst.msk [vmem:[%s676] sm:$0xff] %vm1266, %v1264
        %1268 = vst.msk [vmem:[%s676 + $0x8] sm:$0xff] %vm1266, %v1265
        %1269 = vrot.lane.b32.xlu0 %v1136, 96
        %v1270 = vpop.permute.xlu0 %1269
        %1271 = vrot.lane.b32.xlu0 %v1137, 96
        %v1272 = vpop.permute.xlu0 %1271
        %1273 = vrot.lane.b32.xlu0 %v1142, 96
        %v1274 = vpop.permute.xlu0 %1273
        %1275 = vrot.lane.b32.xlu0 %v1143, 96
        %v1276 = vpop.permute.xlu0 %1275
        %v1277 = vsel %vm1176, %v1270, 0
        %v1279 = vsel %vm1176, %v1272, 0
        %v1281 = vsel %vm1176, %v1274, 0
        %v1283 = vsel %vm1176, %v1276, 0
        %1285 = vmatprep.subr.mxu0 0.0
        %1286 = vmatpush1.xpose.msra.mxu0 %v1281
        %1287 = vmatprep.subr.mxu0 0.0
        %1288 = vmatpush1.xpose.msra.mxu0 %v1283
        %1289 = vmatprep.subr.mxu0 0.0
        %1290 = vmatpush1.xpose.msra.mxu0 0.0
        %1291 = vmatprep.subr.mxu0 0.0
        %1292 = vmatpush1.xpose.msra.mxu0 0.0
        %1293 = vmatprep.subr.mxu0 0.0
        %1294 = vmatpush1.xpose.msra.mxu0 0.0
        %1295 = vmatprep.subr.mxu0 0.0
        %1296 = vmatpush1.xpose.msra.mxu0 0.0
        %1297 = vmatprep.subr.mxu0 0.0
        %1298 = vmatpush1.xpose.msra.mxu0 0.0
        %1299 = vmatprep.subr.mxu0 0.0
        %1300 = vmatpush1.xpose.msra.mxu0 0.0
        %1301 = vmatprep.subr.mxu0 0.0
        %1302 = vmatpush1.xpose.msra.mxu0 0.0
        %1303 = vmatprep.subr.mxu0 0.0
        %1304 = vmatpush1.xpose.msra.mxu0 0.0
        %1305 = vmatprep.subr.mxu0 0.0
        %1306 = vmatpush1.xpose.msra.mxu0 0.0
        %1307 = vmatprep.subr.mxu0 0.0
        %1308 = vmatpush1.xpose.msra.mxu0 0.0
        %1309 = vmatprep.subr.mxu0 0.0
        %1310 = vmatpush1.xpose.msra.mxu0 0.0
        %1311 = vmatprep.subr.mxu0 0.0
        %1312 = vmatpush1.xpose.msra.mxu0 0.0
        %1313 = vmatprep.subr.mxu0 0.0
        %1314 = vmatpush1.xpose.msra.mxu0 0.0
        %1315 = vmatprep.subr.mxu0 0.0
        %1316 = vmatpush1.xpose.msra.mxu0 0.0
        %1317 = vmatprep.subr.mxu0 0.0
        %1318 = vmatpush1.xpose.msra.mxu0 0.0
        %1319 = vmatprep.subr.mxu0 0.0
        %1320 = vmatpush1.xpose.msra.mxu0 0.0
        %1321 = vmatprep.subr.mxu0 0.0
        %1322 = vmatpush1.xpose.msra.mxu0 0.0
        %1323 = vmatprep.subr.mxu0 0.0
        %1324 = vmatpush1.xpose.msra.mxu0 0.0
        %1325 = vmatprep.subr.mxu0 0.0
        %1326 = vmatpush1.xpose.msra.mxu0 0.0
        %1327 = vmatprep.subr.mxu0 0.0
        %1328 = vmatpush1.xpose.msra.mxu0 0.0
        %1329 = vmatprep.subr.mxu0 0.0
        %1330 = vmatpush1.xpose.msra.mxu0 0.0
        %1331 = vmatprep.subr.mxu0 0.0
        %1332 = vmatpush1.xpose.msra.mxu0 0.0
        %1333 = vmatprep.subr.mxu0 0.0
        %1334 = vmatpush1.xpose.msra.mxu0 0.0
        %1335 = vmatprep.subr.mxu0 0.0
        %1336 = vmatpush1.xpose.msra.mxu0 0.0
        %1337 = vmatprep.subr.mxu0 0.0
        %1338 = vmatpush1.xpose.msra.mxu0 0.0
        %1339 = vmatprep.subr.mxu0 0.0
        %1340 = vmatpush1.xpose.msra.mxu0 0.0
        %1341 = vmatprep.subr.mxu0 0.0
        %1342 = vmatpush1.xpose.msra.mxu0 0.0
        %1343 = vmatprep.subr.mxu0 0.0
        %1344 = vmatpush1.xpose.msra.mxu0 0.0
        %1345 = vmatprep.subr.mxu0 0.0
        %1346 = vmatpush1.xpose.msra.mxu0 0.0
        %1347 = vmatprep.subr.mxu0 0.0
        %1348 = vmatpush1.xpose.msra.mxu0 0.0
        %1349 = vmatprep.mubr.f32.mxu0 0.0
        %1350 = vmatmul.mubr.f32.gmra.mrb[0].mxu0 %v1277
        %v1351 = vpop.f32.mrb[0].mxu0
        %v1352 = vadd.f32 0.0, %v1351
        %v1353 = vpop.f32.mrb[0].mxu0
        %1354 = vmatprep.mubr.f32.mxu0 0.0
        %1355 = vmatmul.mubr.f32.gmra.mrb[0].mxu0 %v1279
        %v1356 = vpop.f32.mrb[0].mxu0
        %v1357 = vadd.f32 0.0, %v1356
        %v1358 = vpop.f32.mrb[0].mxu0
        %1359 = vdwg.mxu0
        %v1360 = vsel %vm1174, %v1352, -1e+12
        %v1361 = vsel %vm1175, %v1357, -1e+12
        %s1362 = scalar_lea.vmem %s676, 16
        %1363 = vst.msk [vmem:[%s1362] sm:$0xff] %vm1266, %v1360
        %1364 = vst.msk [vmem:[%s1362 + $0x8] sm:$0xff] %vm1266, %v1361
        %1365 = vrot.lane.b32.xlu0 %v1136, 64
        %v1366 = vpop.permute.xlu0 %1365
        %1367 = vrot.lane.b32.xlu0 %v1137, 64
        %v1368 = vpop.permute.xlu0 %1367
        %1369 = vrot.lane.b32.xlu0 %v1142, 64
        %v1370 = vpop.permute.xlu0 %1369
        %1371 = vrot.lane.b32.xlu0 %v1143, 64
        %v1372 = vpop.permute.xlu0 %1371
        %v1373 = vsel %vm1176, %v1366, 0
        %v1375 = vsel %vm1176, %v1368, 0
        %v1377 = vsel %vm1176, %v1370, 0
        %v1379 = vsel %vm1176, %v1372, 0
        %1381 = vmatprep.subr.mxu0 0.0
        %1382 = vmatpush1.xpose.msra.mxu0 %v1377
        %1383 = vmatprep.subr.mxu0 0.0
        %1384 = vmatpush1.xpose.msra.mxu0 %v1379
        %1385 = vmatprep.subr.mxu0 0.0
        %1386 = vmatpush1.xpose.msra.mxu0 0.0
        %1387 = vmatprep.subr.mxu0 0.0
        %1388 = vmatpush1.xpose.msra.mxu0 0.0
        %1389 = vmatprep.subr.mxu0 0.0
        %1390 = vmatpush1.xpose.msra.mxu0 0.0
        %1391 = vmatprep.subr.mxu0 0.0
        %1392 = vmatpush1.xpose.msra.mxu0 0.0
        %1393 = vmatprep.subr.mxu0 0.0
        %1394 = vmatpush1.xpose.msra.mxu0 0.0
        %1395 = vmatprep.subr.mxu0 0.0
        %1396 = vmatpush1.xpose.msra.mxu0 0.0
        %1397 = vmatprep.subr.mxu0 0.0
        %1398 = vmatpush1.xpose.msra.mxu0 0.0
        %1399 = vmatprep.subr.mxu0 0.0
        %1400 = vmatpush1.xpose.msra.mxu0 0.0
        %1401 = vmatprep.subr.mxu0 0.0
        %1402 = vmatpush1.xpose.msra.mxu0 0.0
        %1403 = vmatprep.subr.mxu0 0.0
        %1404 = vmatpush1.xpose.msra.mxu0 0.0
        %1405 = vmatprep.subr.mxu0 0.0
        %1406 = vmatpush1.xpose.msra.mxu0 0.0
        %1407 = vmatprep.subr.mxu0 0.0
        %1408 = vmatpush1.xpose.msra.mxu0 0.0
        %1409 = vmatprep.subr.mxu0 0.0
        %1410 = vmatpush1.xpose.msra.mxu0 0.0
        %1411 = vmatprep.subr.mxu0 0.0
        %1412 = vmatpush1.xpose.msra.mxu0 0.0
        %1413 = vmatprep.subr.mxu0 0.0
        %1414 = vmatpush1.xpose.msra.mxu0 0.0
        %1415 = vmatprep.subr.mxu0 0.0
        %1416 = vmatpush1.xpose.msra.mxu0 0.0
        %1417 = vmatprep.subr.mxu0 0.0
        %1418 = vmatpush1.xpose.msra.mxu0 0.0
        %1419 = vmatprep.subr.mxu0 0.0
        %1420 = vmatpush1.xpose.msra.mxu0 0.0
        %1421 = vmatprep.subr.mxu0 0.0
        %1422 = vmatpush1.xpose.msra.mxu0 0.0
        %1423 = vmatprep.subr.mxu0 0.0
        %1424 = vmatpush1.xpose.msra.mxu0 0.0
        %1425 = vmatprep.subr.mxu0 0.0
        %1426 = vmatpush1.xpose.msra.mxu0 0.0
        %1427 = vmatprep.subr.mxu0 0.0
        %1428 = vmatpush1.xpose.msra.mxu0 0.0
        %1429 = vmatprep.subr.mxu0 0.0
        %1430 = vmatpush1.xpose.msra.mxu0 0.0
        %1431 = vmatprep.subr.mxu0 0.0
        %1432 = vmatpush1.xpose.msra.mxu0 0.0
        %1433 = vmatprep.subr.mxu0 0.0
        %1434 = vmatpush1.xpose.msra.mxu0 0.0
        %1435 = vmatprep.subr.mxu0 0.0
        %1436 = vmatpush1.xpose.msra.mxu0 0.0
        %1437 = vmatprep.subr.mxu0 0.0
        %1438 = vmatpush1.xpose.msra.mxu0 0.0
        %1439 = vmatprep.subr.mxu0 0.0
        %1440 = vmatpush1.xpose.msra.mxu0 0.0
        %1441 = vmatprep.subr.mxu0 0.0
        %1442 = vmatpush1.xpose.msra.mxu0 0.0
        %1443 = vmatprep.subr.mxu0 0.0
        %1444 = vmatpush1.xpose.msra.mxu0 0.0
        %1445 = vmatprep.mubr.f32.mxu0 0.0
        %1446 = vmatmul.mubr.f32.gmra.mrb[0].mxu0 %v1373
        %v1447 = vpop.f32.mrb[0].mxu0
        %v1448 = vadd.f32 0.0, %v1447
        %v1449 = vpop.f32.mrb[0].mxu0
        %1450 = vmatprep.mubr.f32.mxu0 0.0
        %1451 = vmatmul.mubr.f32.gmra.mrb[0].mxu0 %v1375
        %v1452 = vpop.f32.mrb[0].mxu0
        %v1453 = vadd.f32 0.0, %v1452
        %v1454 = vpop.f32.mrb[0].mxu0
        %1455 = vdwg.mxu0
        %v1456 = vsel %vm1174, %v1448, -1e+12
        %v1457 = vsel %vm1175, %v1453, -1e+12
        %s1458 = scalar_lea.vmem %s676, 32
        %1459 = vst.msk [vmem:[%s1458] sm:$0xff] %vm1266, %v1456
        %1460 = vst.msk [vmem:[%s1458 + $0x8] sm:$0xff] %vm1266, %v1457
        %1461 = vrot.lane.b32.xlu0 %v1136, 32
        %v1462 = vpop.permute.xlu0 %1461
        %1463 = vrot.lane.b32.xlu0 %v1137, 32
        %v1464 = vpop.permute.xlu0 %1463
        %1465 = vrot.lane.b32.xlu0 %v1142, 32
        %v1466 = vpop.permute.xlu0 %1465
        %1467 = vrot.lane.b32.xlu0 %v1143, 32
        %v1468 = vpop.permute.xlu0 %1467
        %v1469 = vsel %vm1176, %v1462, 0
        %v1471 = vsel %vm1176, %v1464, 0
        %v1473 = vsel %vm1176, %v1466, 0
        %v1475 = vsel %vm1176, %v1468, 0
        %1477 = vmatprep.subr.mxu0 0.0
        %1478 = vmatpush1.xpose.msra.mxu0 %v1473
        %1479 = vmatprep.subr.mxu0 0.0
        %1480 = vmatpush1.xpose.msra.mxu0 %v1475
        %1481 = vmatprep.subr.mxu0 0.0
        %1482 = vmatpush1.xpose.msra.mxu0 0.0
        %1483 = vmatprep.subr.mxu0 0.0
        %1484 = vmatpush1.xpose.msra.mxu0 0.0
        %1485 = vmatprep.subr.mxu0 0.0
        %1486 = vmatpush1.xpose.msra.mxu0 0.0
        %1487 = vmatprep.subr.mxu0 0.0
        %1488 = vmatpush1.xpose.msra.mxu0 0.0
        %1489 = vmatprep.subr.mxu0 0.0
        %1490 = vmatpush1.xpose.msra.mxu0 0.0
        %1491 = vmatprep.subr.mxu0 0.0
        %1492 = vmatpush1.xpose.msra.mxu0 0.0
        %1493 = vmatprep.subr.mxu0 0.0
        %1494 = vmatpush1.xpose.msra.mxu0 0.0
        %1495 = vmatprep.subr.mxu0 0.0
        %1496 = vmatpush1.xpose.msra.mxu0 0.0
        %1497 = vmatprep.subr.mxu0 0.0
        %1498 = vmatpush1.xpose.msra.mxu0 0.0
        %1499 = vmatprep.subr.mxu0 0.0
        %1500 = vmatpush1.xpose.msra.mxu0 0.0
        %1501 = vmatprep.subr.mxu0 0.0
        %1502 = vmatpush1.xpose.msra.mxu0 0.0
        %1503 = vmatprep.subr.mxu0 0.0
        %1504 = vmatpush1.xpose.msra.mxu0 0.0
        %1505 = vmatprep.subr.mxu0 0.0
        %1506 = vmatpush1.xpose.msra.mxu0 0.0
        %1507 = vmatprep.subr.mxu0 0.0
        %1508 = vmatpush1.xpose.msra.mxu0 0.0
        %1509 = vmatprep.subr.mxu0 0.0
        %1510 = vmatpush1.xpose.msra.mxu0 0.0
        %1511 = vmatprep.subr.mxu0 0.0
        %1512 = vmatpush1.xpose.msra.mxu0 0.0
        %1513 = vmatprep.subr.mxu0 0.0
        %1514 = vmatpush1.xpose.msra.mxu0 0.0
        %1515 = vmatprep.subr.mxu0 0.0
        %1516 = vmatpush1.xpose.msra.mxu0 0.0
        %1517 = vmatprep.subr.mxu0 0.0
        %1518 = vmatpush1.xpose.msra.mxu0 0.0
        %1519 = vmatprep.subr.mxu0 0.0
        %1520 = vmatpush1.xpose.msra.mxu0 0.0
        %1521 = vmatprep.subr.mxu0 0.0
        %1522 = vmatpush1.xpose.msra.mxu0 0.0
        %1523 = vmatprep.subr.mxu0 0.0
        %1524 = vmatpush1.xpose.msra.mxu0 0.0
        %1525 = vmatprep.subr.mxu0 0.0
        %1526 = vmatpush1.xpose.msra.mxu0 0.0
        %1527 = vmatprep.subr.mxu0 0.0
        %1528 = vmatpush1.xpose.msra.mxu0 0.0
        %1529 = vmatprep.subr.mxu0 0.0
        %1530 = vmatpush1.xpose.msra.mxu0 0.0
        %1531 = vmatprep.subr.mxu0 0.0
        %1532 = vmatpush1.xpose.msra.mxu0 0.0
        %1533 = vmatprep.subr.mxu0 0.0
        %1534 = vmatpush1.xpose.msra.mxu0 0.0
        %1535 = vmatprep.subr.mxu0 0.0
        %1536 = vmatpush1.xpose.msra.mxu0 0.0
        %1537 = vmatprep.subr.mxu0 0.0
        %1538 = vmatpush1.xpose.msra.mxu0 0.0
        %1539 = vmatprep.subr.mxu0 0.0
        %1540 = vmatpush1.xpose.msra.mxu0 0.0
        %1541 = vmatprep.mubr.f32.mxu0 0.0
        %1542 = vmatmul.mubr.f32.gmra.mrb[0].mxu0 %v1469
        %v1543 = vpop.f32.mrb[0].mxu0
        %v1544 = vadd.f32 0.0, %v1543
        %v1545 = vpop.f32.mrb[0].mxu0
        %1546 = vmatprep.mubr.f32.mxu0 0.0
        %1547 = vmatmul.mubr.f32.gmra.mrb[0].mxu0 %v1471
        %v1548 = vpop.f32.mrb[0].mxu0
        %v1549 = vadd.f32 0.0, %v1548
        %v1550 = vpop.f32.mrb[0].mxu0
        %1551 = vdwg.mxu0
        %v1552 = vsel %vm1174, %v1544, -1e+12
        %v1553 = vsel %vm1175, %v1549, -1e+12
        %s1554 = scalar_lea.vmem %s676, 48
        %1555 = vst.msk [vmem:[%s1554] sm:$0xff] %vm1266, %v1552
        %1556 = vst.msk [vmem:[%s1554 + $0x8] sm:$0xff] %vm1266, %v1553
        %s1557 = sand.u32 %s311, 1
        %s1558 = scalar_lea.sflag [#allocation5], %s1557
        %s1559 = sand.u32 %s311, 1
        %s1560 = smul.addr %s1559, 16
        %s1561 = scalar_lea.vmem [#allocation18], %s1560
        %s1562 = smul.u32 4, %s40
        %p1563 = scmp.lt.s32.totalorder %s39, 1
        %s1564 = scalar_select %p1563, %s39, 1
        %p1565 = scmp.lt.s32.totalorder %s1562, 19
        %s1566 = scalar_select %p1565, %s1562, 19
        %s1567 = smul.addr %s1566, 2
        %s1568 = smul.addr %s1564, 40
        %s1569 = sadd.s32 %s1567, %s1568
        %s1570 = smul.addr %s1569, 8
        %s1571 = scalar_lea.vmem %s12, %s1570
        // Predicated region
        $region109: #{tpu_custom_call.1} parent=63 // pred_check
          %p1572 = pneg %p321
        $region110: #{tpu_custom_call.1} parent=63 // pred_check_branch
          %1574 = sbr.rel (%p1572) target = $region112
        $region111: #{tpu_custom_call.1} parent=63 // pred_region
          %s1576 = ssub.s32 256, 256
          %1577 = vsyncadd %s1558, %s1576
          %s1578 = smul.addr %s39, 2
          %s1579 = smul.addr %s1578, 128
          %s1580 = scalar_lea.hbm %s11, %s1579
          %s1581 = sshll.u32 %s1561, 4
          %s1582 = int_to_ptr.vmem [resolvable:$true] %s1581
          %1587 = dma.vmem_to_hbm [thread:$0]  %s1582, 256, %s1580, %s1558, 128, 128, 8
        $region112: #{tpu_custom_call.1} parent=63 // pred_fallthru
          _
        // Predicated region
        $region113: #{tpu_custom_call.1} parent=63 // pred_check
          %p1588 = pneg %p349
        $region114: #{tpu_custom_call.1} parent=63 // pred_check_branch
          %1590 = sbr.rel (%p1588) target = $region116
        $region115: #{tpu_custom_call.1} parent=63 // pred_region
          %s1591 = smul.u32 4, %s40
        $region116: #{tpu_custom_call.1} parent=63 // pred_fallthru
          _
      $region64: #{tpu_custom_call.1} parent=5 // pred_fallthru
        _
      %p1592 = scmp.le.s32.totalorder 2, %s30
      // Predicated region
      $region117: #{tpu_custom_call.1} parent=5 // pred_check
        %p1593 = pneg %p1592
      $region118: #{tpu_custom_call.1} parent=5 // pred_check_branch
        %1595 = sbr.rel (%p1593) target = $region120
      $region119: #{tpu_custom_call.1} parent=5 // pred_region
        %s1596 = ssub.s32 %s30, 2
        // Predicated region
        $region121: #{tpu_custom_call.1} parent=119 // pred_check
          %p1597 = pneg %p327
        $region122: #{tpu_custom_call.1} parent=119 // pred_check_branch
          %1599 = sbr.rel (%p1597) target = $region124
        $region123: #{tpu_custom_call.1} parent=119 // pred_region
          %s1600 = sand.u32 %s312, 1
          %s1601 = scalar_lea.sflag [#allocation5], %s1600
          %s1602 = sand.u32 %s312, 1
          %s1603 = smul.addr %s1602, 16
          %s1604 = scalar_lea.vmem [#allocation18], %s1603
          %1605 = dma.done %s1601, 256
        $region124: #{tpu_custom_call.1} parent=119 // pred_fallthru
          _
        // Predicated region
        $region125: #{tpu_custom_call.1} parent=119 // pred_check
          %p1606 = pneg %p355
        $region126: #{tpu_custom_call.1} parent=119 // pred_check_branch
          %1608 = sbr.rel (%p1606) target = $region128
        $region127: #{tpu_custom_call.1} parent=119 // pred_region
          %s1609 = smul.u32 4, %s42
          %p1610 = scmp.lt.s32.totalorder %s41, 1
          %s1611 = scalar_select %p1610, %s41, 1
          %p1612 = scmp.lt.s32.totalorder %s1609, 19
          %s1613 = scalar_select %p1612, %s1609, 19
          %s1614 = smul.addr %s1613, 2
          %s1615 = smul.addr %s1611, 40
          %s1616 = sadd.s32 %s1614, %s1615
          %s1617 = smul.addr %s1616, 8
          %s1618 = scalar_lea.vmem %s12, %s1617
        $region128: #{tpu_custom_call.1} parent=119 // pred_fallthru
          _
      $region120: #{tpu_custom_call.1} parent=5 // pred_fallthru
        _
    $region6: #{tpu_custom_call.1} parent=1 // loop_footer
      %s34 = sadd.s32 1, %s30
    $region7: #{tpu_custom_call.1} parent=1 // loop_footer_branch
      %29 = sbr.rel target = $region3
    $region8: #{tpu_custom_call.1} parent=1 // loop_exit
      _
    %1619 = vsyncpa [#allocation4], 1
    %s1620 = scalar_lea.sflag [#allocation4], 1
    %1621 = vsyncpa %s1620, 1
    %1622 = vsyncpa [#allocation7], 1
    %s1623 = scalar_lea.sflag [#allocation7], 1
    %1624 = vsyncpa %s1623, 1
    %1625 = vsyncpa [#allocation10], 1
    %1626 = vsyncpa [#allocation13], 1
    %1627 = vsyncpa [#allocation5], 1
    %s1628 = scalar_lea.sflag [#allocation5], 1
    %1629 = vsyncpa %s1628, 1

</llo_original>
